<compile_context>
chip_gen: v5e
topology: v5e:2x2
jax: 0.10.0
libtpu: 0.0.40
codegen_flags: <defaults>
</compile_context>

<pallas_src>
import jax
import jax.numpy as jnp
from jax.experimental import pallas as pl
from jax.experimental.pallas import tpu as pltpu

_MIB = 1024 * 1024


def _round_up(x, m):
    return ((x + m - 1) // m) * m


def _cdiv(a, b):
    return -(-a // b)


def _device_vmem_bytes(default=64 * _MIB):
    """Physical VMEM of the attached TPU generation; conservative fallback."""
    try:
        info = pltpu.get_tpu_info()
        cap = getattr(info, "vmem_capacity_bytes", None)
        if cap:
            return int(cap)
    except Exception:
        pass
    return default


def cold_fusion_kernel(
    dec_ref,      # [Bt, Ip]      decoder_hidden (bf16, zero-padded)
    logits_ref,   # [Bt, tk]      lm_logits vocab tile (bf16)
    wproj_ref,    # [tk, Gp]      lm_logits_projection weight tile (int8 or bf16)
    wscale_ref,   # [1, Gp]       f32 per-column dequant scale (ones if unquantized)
    bproj_ref,    # [1, Gp]       f32
    wdec_ref,     # [Ip, Gp+Hp]   fused gate/dnn weights for `dec` (bf16)
    wglm_ref,     # [Gp, Gp]      gate weights for lm-projection part (bf16)
    bg_ref,       # [1, Gp]       f32
    wdlm_ref,     # [Gp, Hp]      dnn weights for gated lm-projection (bf16)
    bd_ref,       # [1, Hp]       f32
    out_ref,      # [Bt, Hp]      fused_state
    acc_ref,      # [Bt, Gp]      f32 scratch: lm_projection accumulator
    decout_ref,   # [Bt, Gp+Hp]   f32 scratch: dec @ wdec (hoisted to k==0)
):
    k = pl.program_id(1)

    @pl.when(k == 0)
    def _():
        acc_ref[...] = jnp.zeros_like(acc_ref)
        # The k-loop is HBM-bound on the W_proj stream, so the MXU has slack
        # here: hoisting the dec-side wide matmul out of the k==last epilogue
        # hides it under the streaming DMAs instead of lengthening the final
        # step of every batch tile.
        decout_ref[...] = jnp.dot(dec_ref[...], wdec_ref[...],
                                  preferred_element_type=jnp.float32)

    # Streamed W_proj tile arrives as int8 (quantized) or bf16; up-cast on the
    # VPU (free under the DMA-bound loop) and accumulate on the MXU in f32.
    w_tile = wproj_ref[...]
    if w_tile.dtype != logits_ref.dtype:
        w_tile = w_tile.astype(jnp.float32).astype(logits_ref.dtype)
    acc_ref[...] += jnp.dot(logits_ref[...], w_tile,
                            preferred_element_type=jnp.float32)

    @pl.when(k == pl.num_programs(1) - 1)
    def _():
        gp = bproj_ref.shape[-1]                                     # static
        # Per-output-column dequant scale folded into the bias add (f32).
        lm_proj = acc_ref[...] * wscale_ref[...] + bproj_ref[...]    # [Bt, Gp]

        gate_dec = decout_ref[:, :gp]                                # f32
        dnn_dec = decout_ref[:, gp:]                                 # f32

        # gate = sigmoid(cat([dec, lm_proj]) @ W_gate^T + b_gate)
        gate_pre = (
            gate_dec
            + jnp.dot(lm_proj.astype(wglm_ref.dtype), wglm_ref[...],
                      preferred_element_type=jnp.float32)
            + bg_ref[...]
        )
        gate = jax.nn.sigmoid(gate_pre)                              # EUP

        # fused_state = relu(cat([dec, gate*lm_proj]) @ W_dnn^T + b_dnn)
        gated = (gate * lm_proj).astype(wdlm_ref.dtype)
        fused_pre = (
            dnn_dec
            + jnp.dot(gated, wdlm_ref[...],
                      preferred_element_type=jnp.float32)
            + bd_ref[...]
        )
        out_ref[...] = jnp.maximum(fused_pre, 0.0).astype(out_ref.dtype)


def prepare_cold_fusion_params(params, input_dim, *, compute_dtype=jnp.bfloat16,
                               quantize_w_proj=True, expected_batch=None,
                               max_b_tile=None, max_k_tile=None,
                               stream_budget_bytes=None):
    """One-time weight prep: transpose / split / fuse / pad / quantize / cast.

    Hoisted out of the per-decode-step hot path.  Tiling limits are chosen per
    TPU generation (v7x has 64 MiB VMEM; v5e/v6e have 128 MiB).
    """
    gate_dim = params["b_proj"].shape[-1]
    hidden_dim = params["b_dnn"].shape[-1]
    vocab = params["w_proj"].shape[-1]

    vmem_cap = _device_vmem_bytes()
    small_vmem = vmem_cap <= 64 * _MIB          # v7x-class
    if max_b_tile is None:
        max_b_tile = 256 if small_vmem else 512
    if max_k_tile is None:
        max_k_tile = 2048 if small_vmem else 4096
    if stream_budget_bytes is None:
        stream_budget_bytes = (18 if small_vmem else 40) * _MIB

    ip = _round_up(input_dim, 128)
    gp = _round_up(gate_dim, 128)
    hp = _round_up(hidden_dim, 128)

    # Vocab-reduction tile: big enough to amortize per-grid-step overhead and
    # issue long DMAs for the bandwidth-bound W_proj stream, small enough that
    # up-to-triple-buffered streamed blocks fit this generation's VMEM budget.
    act_item = jnp.dtype(compute_dtype).itemsize
    w_item = 1 if quantize_w_proj else act_item
    eff_b = max_b_tile if expected_batch is None else min(
        max_b_tile, max(16, _round_up(int(expected_batch), 16)))
    tk = min(max_k_tile, _round_up(vocab, 128))
    while tk > 512 and 3 * (act_item * eff_b * tk + w_item * tk * gp) > stream_budget_bytes:
        tk //= 2
    tk = max(128, _round_up(tk, 128))
    vp = _round_up(vocab, tk)

    def pad2(a, rows, cols):
        return jnp.pad(a, ((0, rows - a.shape[0]), (0, cols - a.shape[1])))

    # PyTorch nn.Linear stores W as [out, in]; kernel consumes [in, out].
    w_proj_t = params["w_proj"].T.astype(jnp.float32)   # [V, G]
    w_gate_t = params["w_gate"].T                       # [I+G, G]
    w_dnn_t = params["w_dnn"].T                         # [I+G, H]
    wg_dec, wg_lm = w_gate_t[:input_dim], w_gate_t[input_dim:]
    wd_dec, wd_lm = w_dnn_t[:input_dim], w_dnn_t[input_dim:]

    if quantize_w_proj:
        # Symmetric per-output-column int8; the f32 scale is folded into the
        # bias add inside the kernel.  Halves the dominant [V, G] HBM stream.
        col_max = jnp.max(jnp.abs(w_proj_t), axis=0, keepdims=True)   # [1, G]
        scale = jnp.where(col_max > 0, col_max, 1.0) / 127.0
        wq = jnp.clip(jnp.round(w_proj_t / scale), -127.0, 127.0).astype(jnp.int8)
        w_proj_store = pad2(wq, vp, gp)                                # int8 [Vp, Gp]
        w_scale = pad2(scale, 1, gp).astype(jnp.float32)
    else:
        w_proj_store = pad2(w_proj_t, vp, gp).astype(compute_dtype)
        w_scale = pad2(jnp.ones((1, gate_dim), jnp.float32), 1, gp)

    # Fuse the two matmuls that share LHS `dec` into one [Ip, Gp+Hp] weight.
    w_dec_cat = jnp.concatenate(
        [pad2(wg_dec, input_dim, gp), pad2(wd_dec, input_dim, hp)], axis=1)
    w_dec_cat = jnp.pad(w_dec_cat, ((0, ip - input_dim), (0, 0)))

    prep = {
        "w_proj": w_proj_store,                                                  # [Vp, Gp]
        "w_scale": w_scale,                                                      # [1, Gp]
        "b_proj": pad2(params["b_proj"].reshape(1, -1), 1, gp).astype(jnp.float32),
        "w_dec": w_dec_cat.astype(compute_dtype),                                # [Ip, Gp+Hp]
        "wg_lm": pad2(wg_lm, gp, gp).astype(compute_dtype),                      # [Gp, Gp]
        "b_gate": pad2(params["b_gate"].reshape(1, -1), 1, gp).astype(jnp.float32),
        "wd_lm": pad2(wd_lm, gp, hp).astype(compute_dtype),                      # [Gp, Hp]
        "b_dnn": pad2(params["b_dnn"].reshape(1, -1), 1, hp).astype(jnp.float32),
    }
    dims = dict(input_dim=input_dim, gate_dim=gate_dim, hidden_dim=hidden_dim,
                vocab=vocab, ip=ip, gp=gp, hp=hp, vp=vp, tk=tk,
                max_b_tile=max_b_tile, compute_dtype=compute_dtype,
                vmem_cap=vmem_cap)
    return prep, dims


def cold_fusion_pallas(decoder_hidden, lm_logits, prep, dims, *, out_dtype=None):
    """decoder_hidden: [B, input_dim]; lm_logits: [B, 1, vocab] (or [B, vocab])."""
    if lm_logits.ndim == 3:
        # squeeze(1)-after-projection == squeeze-before (linear over last dim, seq=1)
        lm_logits = lm_logits[:, 0, :]

    b = decoder_hidden.shape[0]
    ip, gp, hp, vp, tk = dims["ip"], dims["gp"], dims["hp"], dims["vp"], dims["tk"]
    cdt = dims["compute_dtype"]
    if out_dtype is None:
        out_dtype = decoder_hidden.dtype   # pass jnp.bfloat16 to halve output writeback

    # Batch tiling that (a) minimizes phantom batch padding and (b) minimizes
    # how many times the dominant [Vp, Gp] W_proj stream is re-read from HBM.
    n_btiles = _cdiv(b, dims["max_b_tile"])
    b_tile = max(16, _round_up(_cdiv(b, n_btiles), 16))
    bp = _round_up(b, b_tile)
    n_btiles = bp // b_tile

    dec = jnp.pad(decoder_hidden.astype(cdt),
                  ((0, bp - b), (0, ip - decoder_hidden.shape[1])))
    logits = jnp.pad(lm_logits.astype(cdt),
                     ((0, bp - b), (0, vp - lm_logits.shape[1])))

    grid = (n_btiles, vp // tk)
    n_ktiles = grid[1]

    flops = 2 * b * (
        dims["vocab"] * dims["gate_dim"]
        + dims["input_dim"] * (dims["gate_dim"] + dims["hidden_dim"])
        + dims["gate_dim"] * dims["gate_dim"]
        + dims["gate_dim"] * dims["hidden_dim"]
    )
    out_item = jnp.dtype(out_dtype).itemsize
    resident_bytes = sum(int(prep[k].nbytes) for k in
                         ("w_scale", "b_proj", "w_dec", "wg_lm", "b_gate",
                          "wd_lm", "b_dnn"))
    bytes_accessed = int(dec.nbytes + logits.nbytes
                         + n_btiles * int(prep["w_proj"].nbytes)  # re-streamed per batch tile
                         + resident_bytes + bp * hp * out_item)
    cost = pl.CostEstimate(flops=flops, transcendentals=b * dims["gate_dim"],
                           bytes_accessed=bytes_accessed)

    # Deeper buffering on the streamed operands only helps when per-step
    # compute is too small to hide DMA issue latency (decode-sized batch tiles)
    # and there are enough k-steps to pipeline.
    stream_buf = 3 if (b_tile <= 64 and n_ktiles >= 4) else 2

    act_item = jnp.dtype(cdt).itemsize
    w_item = jnp.dtype(prep["w_proj"].dtype).itemsize
    vmem_cap = dims.get("vmem_cap", _device_vmem_bytes())

    def vmem_limit_bytes(resident_buffers):
        streamed = stream_buf * (act_item * b_tile * tk + w_item * tk * gp)
        residents = resident_buffers * (
            act_item * (b_tile * ip + ip * (gp + hp) + gp * gp + gp * hp)
            + 4 * (3 * gp + hp))
        out_bufs = 2 * out_item * b_tile * hp
        scratch = 4 * b_tile * (gp + (gp + hp))          # acc + hoisted dec matmul
        epilogue = 4 * b_tile * (3 * gp + hp)            # lm_proj / gate / gated temps
        est = streamed + residents + out_bufs + scratch + epilogue
        # Clamp to what the device actually has (v7x: only 64 MiB physical).
        return int(min(vmem_cap - 2 * _MIB, max(32 * _MIB, int(est * 1.5))))

    def build(use_pipeline_modes):
        def spec(shape, index_map, buffers=None):
            if use_pipeline_modes and buffers is not None and buffers != 2:
                return pl.BlockSpec(shape, index_map,
                                    pipeline_mode=pl.Buffered(buffers))
            return pl.BlockSpec(shape, index_map)

        in_specs = [
            spec((b_tile, ip), lambda i, k: (i, 0), 1),            # dec (const along k)
            spec((b_tile, tk), lambda i, k: (i, k), stream_buf),   # logits vocab tile
            spec((tk, gp), lambda i, k: (k, 0), stream_buf),       # w_proj vocab tile
            spec((1, gp), lambda i, k: (0, 0), 1),                 # w_scale (resident)
            spec((1, gp), lambda i, k: (0, 0), 1),                 # b_proj
            spec((ip, gp + hp), lambda i, k: (0, 0), 1),           # fused dec weights
            spec((gp, gp), lambda i, k: (0, 0), 1),                # wg_lm
            spec((1, gp), lambda i, k: (0, 0), 1),                 # b_gate
            spec((gp, hp), lambda i, k: (0, 0), 1),                # wd_lm
            spec((1, hp), lambda i, k: (0, 0), 1),                 # b_dnn
        ]
        grid_spec = pltpu.PrefetchScalarGridSpec(
            num_scalar_prefetch=0, grid=grid,
            in_specs=in_specs,
            out_specs=pl.BlockSpec((b_tile, hp), lambda i, k: (i, 0)),
            scratch_shapes=[pltpu.VMEM((b_tile, gp), jnp.float32),
                            pltpu.VMEM((b_tile, gp + hp), jnp.float32)],
        )
        return pl.pallas_call(
            cold_fusion_kernel,
            out_shape=jax.ShapeDtypeStruct((bp, hp), out_dtype),
            grid_spec=grid_spec,
            compiler_params=pltpu.CompilerParams(
                dimension_semantics=("parallel", "arbitrary"),
                vmem_limit_bytes=vmem_limit_bytes(1 if use_pipeline_modes else 2),
            ),
            cost_estimate=cost,
        )

    args = (dec, logits, prep["w_proj"], prep["w_scale"], prep["b_proj"],
            prep["w_dec"], prep["wg_lm"], prep["b_gate"], prep["wd_lm"],
            prep["b_dnn"])

    if hasattr(pl, "Buffered"):
        try:
            fused = build(True)(*args)
        except Exception:
            # Installed jax rejects pipeline_mode: fall back to default
            # double-buffering (correct, just more resident VMEM).
            fused = build(False)(*args)
    else:
        fused = build(False)(*args)

    if bp == b and hp == dims["hidden_dim"]:
        return fused                      # skip the post-kernel copy/slice
    return fused[:b, :dims["hidden_dim"]]


def stub_language_model(tokens, hidden, emb_table):
    """Deterministic stand-in for the external language model.

    tokens: [B, 1] int32. Returns forward_probs [B, 1, vocab] and hidden
    pass-through (mirrors the {'forward_probs', 'hidden'} return dict).
    """
    logits = emb_table[tokens[:, 0]]            # [B, vocab]
    return {"forward_probs": logits[:, None, :], "hidden": hidden}


def cold_fusion_forward(last_predictions, decoder_hidden, lm_hidden, lm_context,
                        prep, dims, emb_table):
    if lm_hidden is None:
        hidden = None
    else:
        # matches lm_hidden.transpose(0, 1) / lm_context.transpose(0, 1)
        hidden = (jnp.swapaxes(lm_hidden, 0, 1), jnp.swapaxes(lm_context, 0, 1))
    ret = stub_language_model(last_predictions, hidden, emb_table)
    lm_logits = ret["forward_probs"]
    new_lm_hidden = ret["hidden"]
    assert lm_logits.shape[1] >= 1
    fused_state = cold_fusion_pallas(decoder_hidden, lm_logits, prep, dims)
    return new_lm_hidden, fused_state


def _reference_forward(decoder_hidden, lm_logits, params):
    """Plain-JAX f32 reference of the hot path (mirrors the PyTorch math)."""
    lm_logits2 = lm_logits[:, 0, :]
    lm_proj = lm_logits2 @ params["w_proj"].T + params["b_proj"]
    gate_in = jnp.concatenate([decoder_hidden, lm_proj], axis=1)
    gate = jax.nn.sigmoid(gate_in @ params["w_gate"].T + params["b_gate"])
    fused_in = jnp.concatenate([decoder_hidden, gate * lm_proj], axis=1)
    return jax.nn.relu(fused_in @ params["w_dnn"].T + params["b_dnn"])


if __name__ == "__main__":
    # Small shapes consistent with the module.
    B = 8
    vocab_size = 64
    input_dim = 32
    gate_dim = 16
    hidden_dim = 32
    num_layers = 1  # for the (kernel-unused) LSTM-style hidden state

    key = jax.random.PRNGKey(0)
    ks = jax.random.split(key, 10)

    # Deterministic parameter init (PyTorch nn.Linear convention: W is [out, in]).
    params = {
        "w_proj": jax.random.normal(ks[0], (gate_dim, vocab_size), jnp.float32) * 0.1,
        "b_proj": jax.random.normal(ks[1], (gate_dim,), jnp.float32) * 0.1,
        "w_gate": jax.random.normal(ks[2], (gate_dim, input_dim + gate_dim), jnp.float32) * 0.1,
        "b_gate": jax.random.normal(ks[3], (gate_dim,), jnp.float32) * 0.1,
        "w_dnn": jax.random.normal(ks[4], (hidden_dim, input_dim + gate_dim), jnp.float32) * 0.1,
        "b_dnn": jax.random.normal(ks[5], (hidden_dim,), jnp.float32) * 0.1,
    }
    emb_table = jax.random.normal(ks[6], (vocab_size, vocab_size), jnp.float32) * 0.1

    # Example inputs.
    last_predictions = jax.random.randint(ks[7], (B, 1), 0, vocab_size, jnp.int32)
    decoder_hidden = jax.random.normal(ks[8], (B, input_dim), jnp.float32)
    lm_hidden = jax.random.normal(ks[9], (B, num_layers, input_dim), jnp.float32)
    lm_context = jnp.zeros_like(lm_hidden)

    # One-time weight prep (hoisted out of the per-step hot path).
    prep, dims = prepare_cold_fusion_params(params, input_dim, expected_batch=B)

    new_lm_hidden, fused_state = cold_fusion_forward(
        last_predictions, decoder_hidden, lm_hidden, lm_context, prep, dims, emb_table
    )
    fused_state = jax.block_until_ready(fused_state)

    # Cross-check against plain-JAX f32 reference. bf16 MXU operands with f32
    # accumulation + int8 W_proj give ~1e-3-level absolute differences at
    # these scales.
    lm_logits = stub_language_model(last_predictions, None, emb_table)["forward_probs"]
    ref = _reference_forward(decoder_hidden, lm_logits, params)
    assert fused_state.shape == (B, hidden_dim)
    assert jnp.allclose(fused_state, ref, atol=2e-2, rtol=2e-2), (
        float(jnp.max(jnp.abs(fused_state - ref)))
    )

    print("KERNEL_OK")
</pallas_src>

<mosaic_0001>
module attributes {stable_mosaic.version = 11 : i64} {
  func.func @cold_fusion_kernel(%arg0: i32, %arg1: i32, %arg2: memref<16x128xbf16, #tpu.memory_space<vmem>>, %arg3: memref<16x128xbf16, #tpu.memory_space<vmem>>, %arg4: memref<128x128xi8, #tpu.memory_space<vmem>>, %arg5: memref<1x128xf32, #tpu.memory_space<vmem>>, %arg6: memref<1x128xf32, #tpu.memory_space<vmem>>, %arg7: memref<128x256xbf16, #tpu.memory_space<vmem>>, %arg8: memref<128x128xbf16, #tpu.memory_space<vmem>>, %arg9: memref<1x128xf32, #tpu.memory_space<vmem>>, %arg10: memref<128x128xbf16, #tpu.memory_space<vmem>>, %arg11: memref<1x128xf32, #tpu.memory_space<vmem>>, %arg12: memref<16x128xf32, #tpu.memory_space<vmem>>, %arg13: memref<16x128xf32, #tpu.memory_space<vmem>>, %arg14: memref<16x256xf32, #tpu.memory_space<vmem>>) attributes {dimension_semantics = [#tpu.dimension_semantics<parallel>, #tpu.dimension_semantics<arbitrary>], iteration_bounds = array<i64: 1, 1>, scalar_prefetch = 0 : i64, scratch_operands = 2 : i64, tpu.core_type = #tpu.core_type<tc>, window_params = [{pipeline_mode = #tpu.pipeline_mode<synchronous>, transform_indices = @transform_0, window_bounds = array<i64: 16, 128>}, {transform_indices = @transform_1, window_bounds = array<i64: 16, 128>}, {transform_indices = @transform_2, window_bounds = array<i64: 128, 128>}, {pipeline_mode = #tpu.pipeline_mode<synchronous>, transform_indices = @transform_3, window_bounds = array<i64: 1, 128>}, {pipeline_mode = #tpu.pipeline_mode<synchronous>, transform_indices = @transform_4, window_bounds = array<i64: 1, 128>}, {pipeline_mode = #tpu.pipeline_mode<synchronous>, transform_indices = @transform_5, window_bounds = array<i64: 128, 256>}, {pipeline_mode = #tpu.pipeline_mode<synchronous>, transform_indices = @transform_6, window_bounds = array<i64: 128, 128>}, {pipeline_mode = #tpu.pipeline_mode<synchronous>, transform_indices = @transform_7, window_bounds = array<i64: 1, 128>}, {pipeline_mode = #tpu.pipeline_mode<synchronous>, transform_indices = @transform_8, window_bounds = array<i64: 128, 128>}, {pipeline_mode = #tpu.pipeline_mode<synchronous>, transform_indices = @transform_9, window_bounds = array<i64: 1, 128>}, {transform_indices = @transform_10, window_bounds = array<i64: 16, 128>}]} {
    %c0_i32 = arith.constant 0 : i32
    %0 = arith.cmpi eq, %arg1, %c0_i32 : i32
    %1 = arith.extui %0 : i1 to i32
    %c0_i32_0 = arith.constant 0 : i32
    %2 = arith.cmpi ne, %1, %c0_i32_0 : i32
    scf.if %2 {
      %cst_10 = arith.constant 0.000000e+00 : f32
      %14 = vector.broadcast %cst_10 : f32 to vector<16x128xf32>
      %c0_11 = arith.constant 0 : index
      %c0_12 = arith.constant 0 : index
      %15 = vector.load %arg13[%c0_11, %c0_12] : memref<16x128xf32, #tpu.memory_space<vmem>>, vector<16x128xf32>
      tpu.vector_store %arg13[%c0_11, %c0_12], %14 {strides = array<i32>} : memref<16x128xf32, #tpu.memory_space<vmem>>, vector<16x128xf32>,
      %c0_13 = arith.constant 0 : index
      %c0_14 = arith.constant 0 : index
      %16 = vector.load %arg2[%c0_13, %c0_14] : memref<16x128xbf16, #tpu.memory_space<vmem>>, vector<16x128xbf16>
      %c0_15 = arith.constant 0 : index
      %c0_16 = arith.constant 0 : index
      %17 = vector.load %arg7[%c0_15, %c0_16] : memref<128x256xbf16, #tpu.memory_space<vmem>>, vector<128x256xbf16>
      %cst_17 = arith.constant dense<0.000000e+00> : vector<16x256xf32>
      %18 = tpu.matmul %16, %17, %cst_17 {dimension_numbers = #tpu.dot_dimension_numbers<[1], [0], [0], [1], [0, 0, 1, 1], [], []>} : vector<16x128xbf16>, vector<128x256xbf16>, vector<16x256xf32> -> vector<16x256xf32>
      %c0_18 = arith.constant 0 : index
      %c0_19 = arith.constant 0 : index
      %19 = vector.load %arg14[%c0_18, %c0_19] : memref<16x256xf32, #tpu.memory_space<vmem>>, vector<16x256xf32>
      tpu.vector_store %arg14[%c0_18, %c0_19], %18 {strides = array<i32>} : memref<16x256xf32, #tpu.memory_space<vmem>>, vector<16x256xf32>,
    } else {
    }
    %c0 = arith.constant 0 : index
    %c0_1 = arith.constant 0 : index
    %3 = vector.load %arg4[%c0, %c0_1] : memref<128x128xi8, #tpu.memory_space<vmem>>, vector<128x128xi8>
    %4 = arith.sitofp %3 : vector<128x128xi8> to vector<128x128xf32>
    %5 = arith.truncf %4 : vector<128x128xf32> to vector<128x128xbf16>
    %c0_2 = arith.constant 0 : index
    %c0_3 = arith.constant 0 : index
    %6 = vector.load %arg13[%c0_2, %c0_3] : memref<16x128xf32, #tpu.memory_space<vmem>>, vector<16x128xf32>
    %c0_4 = arith.constant 0 : index
    %c0_5 = arith.constant 0 : index
    %7 = vector.load %arg3[%c0_4, %c0_5] : memref<16x128xbf16, #tpu.memory_space<vmem>>, vector<16x128xbf16>
    %cst = arith.constant dense<0.000000e+00> : vector<16x128xf32>
    %8 = tpu.matmul %7, %5, %cst {dimension_numbers = #tpu.dot_dimension_numbers<[1], [0], [0], [1], [0, 0, 1, 1], [], []>} : vector<16x128xbf16>, vector<128x128xbf16>, vector<16x128xf32> -> vector<16x128xf32>
    %9 = arith.addf %6, %8 : vector<16x128xf32>
    %c0_6 = arith.constant 0 : index
    %c0_7 = arith.constant 0 : index
    %10 = vector.load %arg13[%c0_6, %c0_7] : memref<16x128xf32, #tpu.memory_space<vmem>>, vector<16x128xf32>
    tpu.vector_store %arg13[%c0_6, %c0_7], %9 {strides = array<i32>} : memref<16x128xf32, #tpu.memory_space<vmem>>, vector<16x128xf32>,
    %c0_i32_8 = arith.constant 0 : i32
    %11 = arith.cmpi eq, %arg1, %c0_i32_8 : i32
    %12 = arith.extui %11 : i1 to i32
    %c0_i32_9 = arith.constant 0 : i32
    %13 = arith.cmpi ne, %12, %c0_i32_9 : i32
    scf.if %13 {
      %c0_10 = arith.constant 0 : index
      %c0_11 = arith.constant 0 : index
      %14 = vector.load %arg13[%c0_10, %c0_11] : memref<16x128xf32, #tpu.memory_space<vmem>>, vector<16x128xf32>
      %c0_12 = arith.constant 0 : index
      %c0_13 = arith.constant 0 : index
      %15 = vector.load %arg5[%c0_12, %c0_13] : memref<1x128xf32, #tpu.memory_space<vmem>>, vector<1x128xf32>
      %16 = vector.broadcast %15 : vector<1x128xf32> to vector<16x128xf32>
      %17 = arith.mulf %14, %16 : vector<16x128xf32>
      %c0_14 = arith.constant 0 : index
      %c0_15 = arith.constant 0 : index
      %18 = vector.load %arg6[%c0_14, %c0_15] : memref<1x128xf32, #tpu.memory_space<vmem>>, vector<1x128xf32>
      %19 = vector.broadcast %18 : vector<1x128xf32> to vector<16x128xf32>
      %20 = arith.addf %17, %19 : vector<16x128xf32>
      %c0_16 = arith.constant 0 : index
      %c0_17 = arith.constant 0 : index
      %21 = vector.load %arg14[%c0_16, %c0_17] : memref<16x256xf32, #tpu.memory_space<vmem>>, vector<16x128xf32>
      %c0_18 = arith.constant 0 : index
      %c128 = arith.constant 128 : index
      %22 = vector.load %arg14[%c0_18, %c128] : memref<16x256xf32, #tpu.memory_space<vmem>>, vector<16x128xf32>
      %23 = arith.truncf %20 : vector<16x128xf32> to vector<16x128xbf16>
      %c0_19 = arith.constant 0 : index
      %c0_20 = arith.constant 0 : index
      %24 = vector.load %arg8[%c0_19, %c0_20] : memref<128x128xbf16, #tpu.memory_space<vmem>>, vector<128x128xbf16>
      %cst_21 = arith.constant dense<0.000000e+00> : vector<16x128xf32>
      %25 = tpu.matmul %23, %24, %cst_21 {dimension_numbers = #tpu.dot_dimension_numbers<[1], [0], [0], [1], [0, 0, 1, 1], [], []>} : vector<16x128xbf16>, vector<128x128xbf16>, vector<16x128xf32> -> vector<16x128xf32>
      %26 = arith.addf %21, %25 : vector<16x128xf32>
      %c0_22 = arith.constant 0 : index
      %c0_23 = arith.constant 0 : index
      %27 = vector.load %arg9[%c0_22, %c0_23] : memref<1x128xf32, #tpu.memory_space<vmem>>, vector<1x128xf32>
      %28 = vector.broadcast %27 : vector<1x128xf32> to vector<16x128xf32>
      %29 = arith.addf %26, %28 : vector<16x128xf32>
      %30 = arith.negf %29 : vector<16x128xf32>
      %31 = math.exp %30 : vector<16x128xf32>
      %cst_24 = arith.constant 1.000000e+00 : f32
      %32 = vector.broadcast %cst_24 : f32 to vector<16x128xf32>
      %33 = arith.addf %32, %31 : vector<16x128xf32>
      %34 = arith.divf %32, %33 : vector<16x128xf32>
      %35 = arith.mulf %34, %20 : vector<16x128xf32>
      %36 = arith.truncf %35 : vector<16x128xf32> to vector<16x128xbf16>
      %c0_25 = arith.constant 0 : index
      %c0_26 = arith.constant 0 : index
      %37 = vector.load %arg10[%c0_25, %c0_26] : memref<128x128xbf16, #tpu.memory_space<vmem>>, vector<128x128xbf16>
      %cst_27 = arith.constant dense<0.000000e+00> : vector<16x128xf32>
      %38 = tpu.matmul %36, %37, %cst_27 {dimension_numbers = #tpu.dot_dimension_numbers<[1], [0], [0], [1], [0, 0, 1, 1], [], []>} : vector<16x128xbf16>, vector<128x128xbf16>, vector<16x128xf32> -> vector<16x128xf32>
      %39 = arith.addf %22, %38 : vector<16x128xf32>
      %c0_28 = arith.constant 0 : index
      %c0_29 = arith.constant 0 : index
      %40 = vector.load %arg11[%c0_28, %c0_29] : memref<1x128xf32, #tpu.memory_space<vmem>>, vector<1x128xf32>
      %41 = vector.broadcast %40 : vector<1x128xf32> to vector<16x128xf32>
      %42 = arith.addf %39, %41 : vector<16x128xf32>
      %cst_30 = arith.constant 0.000000e+00 : f32
      %43 = vector.broadcast %cst_30 : f32 to vector<16x128xf32>
      %44 = arith.maximumf %42, %43 : vector<16x128xf32>
      %c0_31 = arith.constant 0 : index
      %c0_32 = arith.constant 0 : index
      %45 = vector.load %arg12[%c0_31, %c0_32] : memref<16x128xf32, #tpu.memory_space<vmem>>, vector<16x128xf32>
      tpu.vector_store %arg12[%c0_31, %c0_32], %44 {strides = array<i32>} : memref<16x128xf32, #tpu.memory_space<vmem>>, vector<16x128xf32>,
    } else {
    }
    return
  }
  func.func @transform_0(%arg0: i32, %arg1: i32) -> (i32, i32) {
    %c0_i32 = arith.constant 0 : i32
    %c0_i32_0 = arith.constant 0 : i32
    return %arg0, %c0_i32 : i32, i32
  }
  func.func @transform_1(%arg0: i32, %arg1: i32) -> (i32, i32) {
    %c0_i32 = arith.constant 0 : i32
    return %arg0, %arg1 : i32, i32
  }
  func.func @transform_2(%arg0: i32, %arg1: i32) -> (i32, i32) {
    %c0_i32 = arith.constant 0 : i32
    %c0_i32_0 = arith.constant 0 : i32
    return %arg1, %c0_i32 : i32, i32
  }
  func.func @transform_3(%arg0: i32, %arg1: i32) -> (i32, i32) {
    %c0_i32 = arith.constant 0 : i32
    %c0_i32_0 = arith.constant 0 : i32
    %c0_i32_1 = arith.constant 0 : i32
    return %c0_i32, %c0_i32_0 : i32, i32
  }
  func.func @transform_4(%arg0: i32, %arg1: i32) -> (i32, i32) {
    %c0_i32 = arith.constant 0 : i32
    %c0_i32_0 = arith.constant 0 : i32
    %c0_i32_1 = arith.constant 0 : i32
    return %c0_i32, %c0_i32_0 : i32, i32
  }
  func.func @transform_5(%arg0: i32, %arg1: i32) -> (i32, i32) {
    %c0_i32 = arith.constant 0 : i32
    %c0_i32_0 = arith.constant 0 : i32
    %c0_i32_1 = arith.constant 0 : i32
    return %c0_i32, %c0_i32_0 : i32, i32
  }
  func.func @transform_6(%arg0: i32, %arg1: i32) -> (i32, i32) {
    %c0_i32 = arith.constant 0 : i32
    %c0_i32_0 = arith.constant 0 : i32
    %c0_i32_1 = arith.constant 0 : i32
    return %c0_i32, %c0_i32_0 : i32, i32
  }
  func.func @transform_7(%arg0: i32, %arg1: i32) -> (i32, i32) {
    %c0_i32 = arith.constant 0 : i32
    %c0_i32_0 = arith.constant 0 : i32
    %c0_i32_1 = arith.constant 0 : i32
    return %c0_i32, %c0_i32_0 : i32, i32
  }
  func.func @transform_8(%arg0: i32, %arg1: i32) -> (i32, i32) {
    %c0_i32 = arith.constant 0 : i32
    %c0_i32_0 = arith.constant 0 : i32
    %c0_i32_1 = arith.constant 0 : i32
    return %c0_i32, %c0_i32_0 : i32, i32
  }
  func.func @transform_9(%arg0: i32, %arg1: i32) -> (i32, i32) {
    %c0_i32 = arith.constant 0 : i32
    %c0_i32_0 = arith.constant 0 : i32
    %c0_i32_1 = arith.constant 0 : i32
    return %c0_i32, %c0_i32_0 : i32, i32
  }
  func.func @transform_10(%arg0: i32, %arg1: i32) -> (i32, i32) {
    %c0_i32 = arith.constant 0 : i32
    %c0_i32_0 = arith.constant 0 : i32
    return %arg0, %c0_i32 : i32, i32
  }
}

module attributes {stable_mosaic.version = 11 : i64} {
  func.func @cold_fusion_kernel(%arg0: i32, %arg1: i32, %arg2: memref<16x128xbf16, #tpu.memory_space<vmem>>, %arg3: memref<16x128xbf16, #tpu.memory_space<vmem>>, %arg4: memref<128x128xi8, #tpu.memory_space<vmem>>, %arg5: memref<1x128xf32, #tpu.memory_space<vmem>>, %arg6: memref<1x128xf32, #tpu.memory_space<vmem>>, %arg7: memref<128x256xbf16, #tpu.memory_space<vmem>>, %arg8: memref<128x128xbf16, #tpu.memory_space<vmem>>, %arg9: memref<1x128xf32, #tpu.memory_space<vmem>>, %arg10: memref<128x128xbf16, #tpu.memory_space<vmem>>, %arg11: memref<1x128xf32, #tpu.memory_space<vmem>>, %arg12: memref<16x128xf32, #tpu.memory_space<vmem>>, %arg13: memref<16x128xf32, #tpu.memory_space<vmem>>, %arg14: memref<16x256xf32, #tpu.memory_space<vmem>>) attributes {dimension_semantics = [#tpu.dimension_semantics<parallel>, #tpu.dimension_semantics<arbitrary>], iteration_bounds = array<i64: 1, 1>, scalar_prefetch = 0 : i64, scratch_operands = 2 : i64, tpu.core_type = #tpu.core_type<tc>, window_params = [{transform_indices = @transform_0, window_bounds = array<i64: 16, 128>}, {transform_indices = @transform_1, window_bounds = array<i64: 16, 128>}, {transform_indices = @transform_2, window_bounds = array<i64: 128, 128>}, {pipeline_mode = #tpu.pipeline_mode<synchronous>, transform_indices = @transform_3, window_bounds = array<i64: 1, 128>}, {pipeline_mode = #tpu.pipeline_mode<synchronous>, transform_indices = @transform_4, window_bounds = array<i64: 1, 128>}, {pipeline_mode = #tpu.pipeline_mode<synchronous>, transform_indices = @transform_5, window_bounds = array<i64: 128, 256>}, {pipeline_mode = #tpu.pipeline_mode<synchronous>, transform_indices = @transform_6, window_bounds = array<i64: 128, 128>}, {pipeline_mode = #tpu.pipeline_mode<synchronous>, transform_indices = @transform_7, window_bounds = array<i64: 1, 128>}, {pipeline_mode = #tpu.pipeline_mode<synchronous>, transform_indices = @transform_8, window_bounds = array<i64: 128, 128>}, {pipeline_mode = #tpu.pipeline_mode<synchronous>, transform_indices = @transform_9, window_bounds = array<i64: 1, 128>}, {transform_indices = @transform_10, window_bounds = array<i64: 16, 128>}]} {
    %c0_i32 = arith.constant 0 : i32
    %0 = arith.cmpi eq, %arg1, %c0_i32 : i32
    %1 = arith.extui %0 : i1 to i32
    %c0_i32_0 = arith.constant 0 : i32
    %2 = arith.cmpi ne, %1, %c0_i32_0 : i32
    scf.if %2 {
      %cst_10 = arith.constant 0.000000e+00 : f32
      %14 = vector.broadcast %cst_10 : f32 to vector<16x128xf32>
      %c0_11 = arith.constant 0 : index
      %c0_12 = arith.constant 0 : index
      %15 = vector.load %arg13[%c0_11, %c0_12] : memref<16x128xf32, #tpu.memory_space<vmem>>, vector<16x128xf32>
      tpu.vector_store %arg13[%c0_11, %c0_12], %14 {strides = array<i32>} : memref<16x128xf32, #tpu.memory_space<vmem>>, vector<16x128xf32>,
      %c0_13 = arith.constant 0 : index
      %c0_14 = arith.constant 0 : index
      %16 = vector.load %arg2[%c0_13, %c0_14] : memref<16x128xbf16, #tpu.memory_space<vmem>>, vector<16x128xbf16>
      %c0_15 = arith.constant 0 : index
      %c0_16 = arith.constant 0 : index
      %17 = vector.load %arg7[%c0_15, %c0_16] : memref<128x256xbf16, #tpu.memory_space<vmem>>, vector<128x256xbf16>
      %cst_17 = arith.constant dense<0.000000e+00> : vector<16x256xf32>
      %18 = tpu.matmul %16, %17, %cst_17 {dimension_numbers = #tpu.dot_dimension_numbers<[1], [0], [0], [1], [0, 0, 1, 1], [], []>} : vector<16x128xbf16>, vector<128x256xbf16>, vector<16x256xf32> -> vector<16x256xf32>
      %c0_18 = arith.constant 0 : index
      %c0_19 = arith.constant 0 : index
      %19 = vector.load %arg14[%c0_18, %c0_19] : memref<16x256xf32, #tpu.memory_space<vmem>>, vector<16x256xf32>
      tpu.vector_store %arg14[%c0_18, %c0_19], %18 {strides = array<i32>} : memref<16x256xf32, #tpu.memory_space<vmem>>, vector<16x256xf32>,
    } else {
    }
    %c0 = arith.constant 0 : index
    %c0_1 = arith.constant 0 : index
    %3 = vector.load %arg4[%c0, %c0_1] : memref<128x128xi8, #tpu.memory_space<vmem>>, vector<128x128xi8>
    %4 = arith.sitofp %3 : vector<128x128xi8> to vector<128x128xf32>
    %5 = arith.truncf %4 : vector<128x128xf32> to vector<128x128xbf16>
    %c0_2 = arith.constant 0 : index
    %c0_3 = arith.constant 0 : index
    %6 = vector.load %arg13[%c0_2, %c0_3] : memref<16x128xf32, #tpu.memory_space<vmem>>, vector<16x128xf32>
    %c0_4 = arith.constant 0 : index
    %c0_5 = arith.constant 0 : index
    %7 = vector.load %arg3[%c0_4, %c0_5] : memref<16x128xbf16, #tpu.memory_space<vmem>>, vector<16x128xbf16>
    %cst = arith.constant dense<0.000000e+00> : vector<16x128xf32>
    %8 = tpu.matmul %7, %5, %cst {dimension_numbers = #tpu.dot_dimension_numbers<[1], [0], [0], [1], [0, 0, 1, 1], [], []>} : vector<16x128xbf16>, vector<128x128xbf16>, vector<16x128xf32> -> vector<16x128xf32>
    %9 = arith.addf %6, %8 : vector<16x128xf32>
    %c0_6 = arith.constant 0 : index
    %c0_7 = arith.constant 0 : index
    %10 = vector.load %arg13[%c0_6, %c0_7] : memref<16x128xf32, #tpu.memory_space<vmem>>, vector<16x128xf32>
    tpu.vector_store %arg13[%c0_6, %c0_7], %9 {strides = array<i32>} : memref<16x128xf32, #tpu.memory_space<vmem>>, vector<16x128xf32>,
    %c0_i32_8 = arith.constant 0 : i32
    %11 = arith.cmpi eq, %arg1, %c0_i32_8 : i32
    %12 = arith.extui %11 : i1 to i32
    %c0_i32_9 = arith.constant 0 : i32
    %13 = arith.cmpi ne, %12, %c0_i32_9 : i32
    scf.if %13 {
      %c0_10 = arith.constant 0 : index
      %c0_11 = arith.constant 0 : index
      %14 = vector.load %arg13[%c0_10, %c0_11] : memref<16x128xf32, #tpu.memory_space<vmem>>, vector<16x128xf32>
      %c0_12 = arith.constant 0 : index
      %c0_13 = arith.constant 0 : index
      %15 = vector.load %arg5[%c0_12, %c0_13] : memref<1x128xf32, #tpu.memory_space<vmem>>, vector<1x128xf32>
      %16 = vector.broadcast %15 : vector<1x128xf32> to vector<16x128xf32>
      %17 = arith.mulf %14, %16 : vector<16x128xf32>
      %c0_14 = arith.constant 0 : index
      %c0_15 = arith.constant 0 : index
      %18 = vector.load %arg6[%c0_14, %c0_15] : memref<1x128xf32, #tpu.memory_space<vmem>>, vector<1x128xf32>
      %19 = vector.broadcast %18 : vector<1x128xf32> to vector<16x128xf32>
      %20 = arith.addf %17, %19 : vector<16x128xf32>
      %c0_16 = arith.constant 0 : index
      %c0_17 = arith.constant 0 : index
      %21 = vector.load %arg14[%c0_16, %c0_17] : memref<16x256xf32, #tpu.memory_space<vmem>>, vector<16x128xf32>
      %c0_18 = arith.constant 0 : index
      %c128 = arith.constant 128 : index
      %22 = vector.load %arg14[%c0_18, %c128] : memref<16x256xf32, #tpu.memory_space<vmem>>, vector<16x128xf32>
      %23 = arith.truncf %20 : vector<16x128xf32> to vector<16x128xbf16>
      %c0_19 = arith.constant 0 : index
      %c0_20 = arith.constant 0 : index
      %24 = vector.load %arg8[%c0_19, %c0_20] : memref<128x128xbf16, #tpu.memory_space<vmem>>, vector<128x128xbf16>
      %cst_21 = arith.constant dense<0.000000e+00> : vector<16x128xf32>
      %25 = tpu.matmul %23, %24, %cst_21 {dimension_numbers = #tpu.dot_dimension_numbers<[1], [0], [0], [1], [0, 0, 1, 1], [], []>} : vector<16x128xbf16>, vector<128x128xbf16>, vector<16x128xf32> -> vector<16x128xf32>
      %26 = arith.addf %21, %25 : vector<16x128xf32>
      %c0_22 = arith.constant 0 : index
      %c0_23 = arith.constant 0 : index
      %27 = vector.load %arg9[%c0_22, %c0_23] : memref<1x128xf32, #tpu.memory_space<vmem>>, vector<1x128xf32>
      %28 = vector.broadcast %27 : vector<1x128xf32> to vector<16x128xf32>
      %29 = arith.addf %26, %28 : vector<16x128xf32>
      %30 = arith.negf %29 : vector<16x128xf32>
      %31 = math.exp %30 : vector<16x128xf32>
      %cst_24 = arith.constant 1.000000e+00 : f32
      %32 = vector.broadcast %cst_24 : f32 to vector<16x128xf32>
      %33 = arith.addf %32, %31 : vector<16x128xf32>
      %34 = arith.divf %32, %33 : vector<16x128xf32>
      %35 = arith.mulf %34, %20 : vector<16x128xf32>
      %36 = arith.truncf %35 : vector<16x128xf32> to vector<16x128xbf16>
      %c0_25 = arith.constant 0 : index
      %c0_26 = arith.constant 0 : index
      %37 = vector.load %arg10[%c0_25, %c0_26] : memref<128x128xbf16, #tpu.memory_space<vmem>>, vector<128x128xbf16>
      %cst_27 = arith.constant dense<0.000000e+00> : vector<16x128xf32>
      %38 = tpu.matmul %36, %37, %cst_27 {dimension_numbers = #tpu.dot_dimension_numbers<[1], [0], [0], [1], [0, 0, 1, 1], [], []>} : vector<16x128xbf16>, vector<128x128xbf16>, vector<16x128xf32> -> vector<16x128xf32>
      %39 = arith.addf %22, %38 : vector<16x128xf32>
      %c0_28 = arith.constant 0 : index
      %c0_29 = arith.constant 0 : index
      %40 = vector.load %arg11[%c0_28, %c0_29] : memref<1x128xf32, #tpu.memory_space<vmem>>, vector<1x128xf32>
      %41 = vector.broadcast %40 : vector<1x128xf32> to vector<16x128xf32>
      %42 = arith.addf %39, %41 : vector<16x128xf32>
      %cst_30 = arith.constant 0.000000e+00 : f32
      %43 = vector.broadcast %cst_30 : f32 to vector<16x128xf32>
      %44 = arith.maximumf %42, %43 : vector<16x128xf32>
      %c0_31 = arith.constant 0 : index
      %c0_32 = arith.constant 0 : index
      %45 = vector.load %arg12[%c0_31, %c0_32] : memref<16x128xf32, #tpu.memory_space<vmem>>, vector<16x128xf32>
      tpu.vector_store %arg12[%c0_31, %c0_32], %44 {strides = array<i32>} : memref<16x128xf32, #tpu.memory_space<vmem>>, vector<16x128xf32>,
    } else {
    }
    return
  }
  func.func @transform_0(%arg0: i32, %arg1: i32) -> (i32, i32) {
    %c0_i32 = arith.constant 0 : i32
    %c0_i32_0 = arith.constant 0 : i32
    return %arg0, %c0_i32 : i32, i32
  }
  func.func @transform_1(%arg0: i32, %arg1: i32) -> (i32, i32) {
    %c0_i32 = arith.constant 0 : i32
    return %arg0, %arg1 : i32, i32
  }
  func.func @transform_2(%arg0: i32, %arg1: i32) -> (i32, i32) {
    %c0_i32 = arith.constant 0 : i32
    %c0_i32_0 = arith.constant 0 : i32
    return %arg1, %c0_i32 : i32, i32
  }
  func.func @transform_3(%arg0: i32, %arg1: i32) -> (i32, i32) {
    %c0_i32 = arith.constant 0 : i32
    %c0_i32_0 = arith.constant 0 : i32
    %c0_i32_1 = arith.constant 0 : i32
    return %c0_i32, %c0_i32_0 : i32, i32
  }
  func.func @transform_4(%arg0: i32, %arg1: i32) -> (i32, i32) {
    %c0_i32 = arith.constant 0 : i32
    %c0_i32_0 = arith.constant 0 : i32
    %c0_i32_1 = arith.constant 0 : i32
    return %c0_i32, %c0_i32_0 : i32, i32
  }
  func.func @transform_5(%arg0: i32, %arg1: i32) -> (i32, i32) {
    %c0_i32 = arith.constant 0 : i32
    %c0_i32_0 = arith.constant 0 : i32
    %c0_i32_1 = arith.constant 0 : i32
    return %c0_i32, %c0_i32_0 : i32, i32
  }
  func.func @transform_6(%arg0: i32, %arg1: i32) -> (i32, i32) {
    %c0_i32 = arith.constant 0 : i32
    %c0_i32_0 = arith.constant 0 : i32
    %c0_i32_1 = arith.constant 0 : i32
    return %c0_i32, %c0_i32_0 : i32, i32
  }
  func.func @transform_7(%arg0: i32, %arg1: i32) -> (i32, i32) {
    %c0_i32 = arith.constant 0 : i32
    %c0_i32_0 = arith.constant 0 : i32
    %c0_i32_1 = arith.constant 0 : i32
    return %c0_i32, %c0_i32_0 : i32, i32
  }
  func.func @transform_8(%arg0: i32, %arg1: i32) -> (i32, i32) {
    %c0_i32 = arith.constant 0 : i32
    %c0_i32_0 = arith.constant 0 : i32
    %c0_i32_1 = arith.constant 0 : i32
    return %c0_i32, %c0_i32_0 : i32, i32
  }
  func.func @transform_9(%arg0: i32, %arg1: i32) -> (i32, i32) {
    %c0_i32 = arith.constant 0 : i32
    %c0_i32_0 = arith.constant 0 : i32
    %c0_i32_1 = arith.constant 0 : i32
    return %c0_i32, %c0_i32_0 : i32, i32
  }
  func.func @transform_10(%arg0: i32, %arg1: i32) -> (i32, i32) {
    %c0_i32 = arith.constant 0 : i32
    %c0_i32_0 = arith.constant 0 : i32
    return %arg0, %c0_i32 : i32, i32
  }
}

</mosaic_0001>

<llo_original>
// kernel: tpu_custom_call.1
$region0: #{tpu_custom_call.1}
  #allocation0 [shape = 'u32[]', space=smem, size = 0x4, offset = 0x4, fixed_abs, tag = 'smem constant byte address 0x4 - core index']
  #allocation1 [shape = 'u32[72,128]{1,0:T(1,128)}', space=vmem, size = 0x9000, scoped, tag = 'internal scratch']
  #allocation2 [shape = 'f32[16,128]{1,0:T(8,128)}', space=vmem, size = 0x2000, scoped, tag = 'scratch operand']
  #allocation3 [shape = 'f32[16,256]{1,0:T(8,128)}', space=vmem, size = 0x4000, scoped, tag = 'scratch operand']
  %s0 = inlined_call_operand.hbm [shape: bf16[16,128], index: 0, kind: input, shape index: {}]
  %s1 = inlined_call_operand.hbm [shape: bf16[16,128], index: 1, kind: input, shape index: {}]
  %s2 = inlined_call_operand.hbm [shape: s8[128,128], index: 2, kind: input, shape index: {}]
  %s3 = inlined_call_operand.vmem [shape: f32[1,128], index: 3, kind: input, shape index: {}]
  %s4 = inlined_call_operand.vmem [shape: f32[1,128], index: 4, kind: input, shape index: {}]
  %s5 = inlined_call_operand.hbm [shape: bf16[128,256], index: 5, kind: input, shape index: {}]
  %s6 = inlined_call_operand.hbm [shape: bf16[128,128], index: 6, kind: input, shape index: {}]
  %s7 = inlined_call_operand.vmem [shape: f32[1,128], index: 7, kind: input, shape index: {}]
  %s8 = inlined_call_operand.hbm [shape: bf16[128,128], index: 8, kind: input, shape index: {}]
  %s9 = inlined_call_operand.vmem [shape: f32[1,128], index: 9, kind: input, shape index: {}]
  %s10 = inlined_call_operand.hbm [shape: f32[16,128], index: 10, kind: output, shape index: {}]
  %s11 = sld [smem:[#allocation0]]
  $region82: #{tpu_custom_call.1} parent=0
    _
  %s13 = ssub.s32 1, %s11
  %s14 = scalar_select 0, %s13, %s11
  $region1: #{tpu_custom_call.1} parent=0
    #allocation4 [shape = 'u8[4096]{0}', space=vmem, size = 0x1000, scoped, tag = 'input window, operand 0, single buffered']
    #allocation5 [shape = 's32[1]{0}', space=sflag, size = 0x4, scoped, tag = 'scoped memory for tpu_custom_call.1']
    #allocation6 [shape = 's32[1]{0}', space=sflag, size = 0x4, scoped, tag = 'scoped memory for tpu_custom_call.1']
    #allocation7 [shape = 'u8[4096]{0}', space=vmem, size = 0x1000, scoped, tag = 'input window, operand 1, single buffered']
    #allocation8 [shape = 's32[1]{0}', space=sflag, size = 0x4, scoped, tag = 'scoped memory for tpu_custom_call.1']
    #allocation9 [shape = 'u8[16384]{0}', space=vmem, size = 0x4000, scoped, tag = 'input window, operand 2, single buffered']
    #allocation10 [shape = 'u8[65536]{0}', space=vmem, size = 0x10000, scoped, tag = 'input window, operand 5, single buffered']
    #allocation11 [shape = 's32[1]{0}', space=sflag, size = 0x4, scoped, tag = 'scoped memory for tpu_custom_call.1']
    #allocation12 [shape = 'u8[32768]{0}', space=vmem, size = 0x8000, scoped, tag = 'input window, operand 6, single buffered']
    #allocation13 [shape = 'u8[32768]{0}', space=vmem, size = 0x8000, scoped, tag = 'input window, operand 8, single buffered']
    #allocation14 [shape = 's32[1]{0}', space=sflag, size = 0x4, scoped, tag = 'scoped memory for tpu_custom_call.1']
    #allocation15 [shape = 'u8[8192]{0}', space=vmem, size = 0x2000, scoped, tag = 'output window, operand 0, single buffered']
    %15 = vsyncpa [#allocation5], 0
    %16 = vsyncpa [#allocation8], 0
    %17 = vsyncpa [#allocation11], 0
    %18 = vsyncpa [#allocation14], 0
    %19 = vsyncpa [#allocation6], 0
    // Predicated region
    $region2: #{tpu_custom_call.1} parent=1 // pred_check
      _
    $region3: #{tpu_custom_call.1} parent=1 // pred_check_branch
      %21 = sbr.rel (0) target = $region5
    $region4: #{tpu_custom_call.1} parent=1 // pred_region
      %23 = vsyncadd [#allocation5], 0
      %s24 = sshll.u32 %s0, 4
      %s25 = int_to_ptr.hbm [resolvable:$true] %s24
      %s26 = sshll.u32 [#allocation4], 4
      %s27 = int_to_ptr.vmem [resolvable:$true] %s26
      %32 = dma.hbm_to_vmem [thread:$0]  %s25, 128, %s27, [#allocation5], 64, 64, 4
    $region5: #{tpu_custom_call.1} parent=1 // pred_fallthru
      _
    // Predicated region
    $region6: #{tpu_custom_call.1} parent=1 // pred_check
      _
    $region7: #{tpu_custom_call.1} parent=1 // pred_check_branch
      %34 = sbr.rel (0) target = $region9
    $region8: #{tpu_custom_call.1} parent=1 // pred_region
      %36 = vsyncadd [#allocation8], 0
      %s37 = sshll.u32 %s1, 4
      %s38 = int_to_ptr.hbm [resolvable:$true] %s37
      %s39 = sshll.u32 [#allocation7], 4
      %s40 = int_to_ptr.vmem [resolvable:$true] %s39
      %45 = dma.hbm_to_vmem [thread:$0]  %s38, 128, %s40, [#allocation8], 64, 64, 4
    $region9: #{tpu_custom_call.1} parent=1 // pred_fallthru
      _
    // Predicated region
    $region10: #{tpu_custom_call.1} parent=1 // pred_check
      _
    $region11: #{tpu_custom_call.1} parent=1 // pred_check_branch
      %47 = sbr.rel (0) target = $region13
    $region12: #{tpu_custom_call.1} parent=1 // pred_region
      %49 = vsyncadd [#allocation8], 0
      %s50 = sshll.u32 %s2, 4
      %s51 = int_to_ptr.hbm [resolvable:$true] %s50
      %s52 = sshll.u32 [#allocation9], 4
      %s53 = int_to_ptr.vmem [resolvable:$true] %s52
      %58 = dma.hbm_to_vmem [thread:$0]  %s51, 512, %s53, [#allocation8], 128, 128, 8
    $region13: #{tpu_custom_call.1} parent=1 // pred_fallthru
      _
    // Predicated region
    $region14: #{tpu_custom_call.1} parent=1 // pred_check
      _
    $region15: #{tpu_custom_call.1} parent=1 // pred_check_branch
      %60 = sbr.rel (0) target = $region17
    $region16: #{tpu_custom_call.1} parent=1 // pred_region
      _
    $region17: #{tpu_custom_call.1} parent=1 // pred_fallthru
      _
    // Predicated region
    $region18: #{tpu_custom_call.1} parent=1 // pred_check
      _
    $region19: #{tpu_custom_call.1} parent=1 // pred_check_branch
      %62 = sbr.rel (0) target = $region21
    $region20: #{tpu_custom_call.1} parent=1 // pred_region
      _
    $region21: #{tpu_custom_call.1} parent=1 // pred_fallthru
      _
    // Predicated region
    $region22: #{tpu_custom_call.1} parent=1 // pred_check
      _
    $region23: #{tpu_custom_call.1} parent=1 // pred_check_branch
      %64 = sbr.rel (0) target = $region25
    $region24: #{tpu_custom_call.1} parent=1 // pred_region
      %66 = vsyncadd [#allocation11], 0
      %s67 = sshll.u32 %s5, 4
      %s68 = int_to_ptr.hbm [resolvable:$true] %s67
      %s69 = sshll.u32 [#allocation10], 4
      %s70 = int_to_ptr.vmem [resolvable:$true] %s69
      %75 = dma.hbm_to_vmem [thread:$0]  %s68, 2048, %s70, [#allocation11], 128, 128, 8
    $region25: #{tpu_custom_call.1} parent=1 // pred_fallthru
      _
    // Predicated region
    $region26: #{tpu_custom_call.1} parent=1 // pred_check
      _
    $region27: #{tpu_custom_call.1} parent=1 // pred_check_branch
      %77 = sbr.rel (0) target = $region29
    $region28: #{tpu_custom_call.1} parent=1 // pred_region
      %79 = vsyncadd [#allocation11], 0
      %s80 = sshll.u32 %s6, 4
      %s81 = int_to_ptr.hbm [resolvable:$true] %s80
      %s82 = sshll.u32 [#allocation12], 4
      %s83 = int_to_ptr.vmem [resolvable:$true] %s82
      %88 = dma.hbm_to_vmem [thread:$0]  %s81, 1024, %s83, [#allocation11], 64, 64, 4
    $region29: #{tpu_custom_call.1} parent=1 // pred_fallthru
      _
    // Predicated region
    $region30: #{tpu_custom_call.1} parent=1 // pred_check
      _
    $region31: #{tpu_custom_call.1} parent=1 // pred_check_branch
      %90 = sbr.rel (0) target = $region33
    $region32: #{tpu_custom_call.1} parent=1 // pred_region
      _
    $region33: #{tpu_custom_call.1} parent=1 // pred_fallthru
      _
    // Predicated region
    $region34: #{tpu_custom_call.1} parent=1 // pred_check
      _
    $region35: #{tpu_custom_call.1} parent=1 // pred_check_branch
      %92 = sbr.rel (0) target = $region37
    $region36: #{tpu_custom_call.1} parent=1 // pred_region
      %94 = vsyncadd [#allocation14], 0
      %s95 = sshll.u32 %s8, 4
      %s96 = int_to_ptr.hbm [resolvable:$true] %s95
      %s97 = sshll.u32 [#allocation13], 4
      %s98 = int_to_ptr.vmem [resolvable:$true] %s97
      %103 = dma.hbm_to_vmem [thread:$0]  %s96, 1024, %s98, [#allocation14], 64, 64, 4
    $region37: #{tpu_custom_call.1} parent=1 // pred_fallthru
      _
    // Predicated region
    $region38: #{tpu_custom_call.1} parent=1 // pred_check
      _
    $region39: #{tpu_custom_call.1} parent=1 // pred_check_branch
      %105 = sbr.rel (0) target = $region41
    $region40: #{tpu_custom_call.1} parent=1 // pred_region
      _
    $region41: #{tpu_custom_call.1} parent=1 // pred_fallthru
      _
    // Predicated region
    $region42: #{tpu_custom_call.1} parent=1 // pred_check
      _
    $region43: #{tpu_custom_call.1} parent=1 // pred_check_branch
      %107 = sbr.rel (0) target = $region45
    $region44: #{tpu_custom_call.1} parent=1 // pred_region
      %109 = dma.done [#allocation5], 128
    $region45: #{tpu_custom_call.1} parent=1 // pred_fallthru
      _
    // Predicated region
    $region46: #{tpu_custom_call.1} parent=1 // pred_check
      _
    $region47: #{tpu_custom_call.1} parent=1 // pred_check_branch
      %111 = sbr.rel (0) target = $region49
    $region48: #{tpu_custom_call.1} parent=1 // pred_region
      %113 = dma.done [#allocation8], 128
    $region49: #{tpu_custom_call.1} parent=1 // pred_fallthru
      _
    // Predicated region
    $region50: #{tpu_custom_call.1} parent=1 // pred_check
      _
    $region51: #{tpu_custom_call.1} parent=1 // pred_check_branch
      %115 = sbr.rel (0) target = $region53
    $region52: #{tpu_custom_call.1} parent=1 // pred_region
      %117 = dma.done [#allocation8], 512
    $region53: #{tpu_custom_call.1} parent=1 // pred_fallthru
      _
    // Predicated region
    $region54: #{tpu_custom_call.1} parent=1 // pred_check
      _
    $region55: #{tpu_custom_call.1} parent=1 // pred_check_branch
      %119 = sbr.rel (0) target = $region57
    $region56: #{tpu_custom_call.1} parent=1 // pred_region
      %121 = dma.done [#allocation11], 2048
    $region57: #{tpu_custom_call.1} parent=1 // pred_fallthru
      _
    // Predicated region
    $region58: #{tpu_custom_call.1} parent=1 // pred_check
      _
    $region59: #{tpu_custom_call.1} parent=1 // pred_check_branch
      %123 = sbr.rel (0) target = $region61
    $region60: #{tpu_custom_call.1} parent=1 // pred_region
      %125 = dma.done [#allocation11], 1024
    $region61: #{tpu_custom_call.1} parent=1 // pred_fallthru
      _
    // Predicated region
    $region62: #{tpu_custom_call.1} parent=1 // pred_check
      _
    $region63: #{tpu_custom_call.1} parent=1 // pred_check_branch
      %127 = sbr.rel (0) target = $region65
    $region64: #{tpu_custom_call.1} parent=1 // pred_region
      %129 = dma.done [#allocation14], 1024
    $region65: #{tpu_custom_call.1} parent=1 // pred_fallthru
      _
    %p130 = scmp.eq.s32.totalorder 0, 0
    // Predicated region
    $region66: #{tpu_custom_call.1} parent=1 // pred_check
      %p131 = pneg %p130
    $region67: #{tpu_custom_call.1} parent=1 // pred_check_branch
      %133 = sbr.rel (%p131) target = $region69
    $region68: #{tpu_custom_call.1} parent=1 // pred_region
      %134 = vst [vmem:[#allocation2] sm:$0xff] 0.0
      %135 = vst [vmem:[#allocation2 + $0x8] sm:$0xff] 0.0
      %v136 = vld [vmem:[#allocation4] sm:$0xf]
      %v137 = vld [vmem:[#allocation4 + $0x4] sm:$0xf]
      %v138 = vld [vmem:[#allocation10] sm:$0xff]
      %v139 = vld [vmem:[#allocation10 + $0x8] sm:$0xff]
      %v140 = vld [vmem:[#allocation10 + $0x10] sm:$0xff]
      %v141 = vld [vmem:[#allocation10 + $0x18] sm:$0xff]
      %v142 = vld [vmem:[#allocation10 + $0x20] sm:$0xff]
      %v143 = vld [vmem:[#allocation10 + $0x28] sm:$0xff]
      %v144 = vld [vmem:[#allocation10 + $0x30] sm:$0xff]
      %v145 = vld [vmem:[#allocation10 + $0x38] sm:$0xff]
      %v146 = vld [vmem:[#allocation10 + $0x40] sm:$0xff]
      %v147 = vld [vmem:[#allocation10 + $0x48] sm:$0xff]
      %v148 = vld [vmem:[#allocation10 + $0x50] sm:$0xff]
      %v149 = vld [vmem:[#allocation10 + $0x58] sm:$0xff]
      %v150 = vld [vmem:[#allocation10 + $0x60] sm:$0xff]
      %v151 = vld [vmem:[#allocation10 + $0x68] sm:$0xff]
      %v152 = vld [vmem:[#allocation10 + $0x70] sm:$0xff]
      %v153 = vld [vmem:[#allocation10 + $0x78] sm:$0xff]
      %v156 = vunpack.c.l.b16 %v136
      %v157 = vunpack.c.l.b16 %v137
      %v158 = vpack.c.b16 %v157, %v156
      %v176 = vunpack.c.l.b16 %v138
      %v177 = vunpack.c.h.b16 %v138
      %v178 = vunpack.c.l.b16 %v139
      %v179 = vunpack.c.h.b16 %v139
      %v180 = vunpack.c.l.b16 %v140
      %v181 = vunpack.c.h.b16 %v140
      %v182 = vunpack.c.l.b16 %v141
      %v183 = vunpack.c.h.b16 %v141
      %v184 = vunpack.c.l.b16 %v142
      %v185 = vunpack.c.h.b16 %v142
      %v186 = vunpack.c.l.b16 %v143
      %v187 = vunpack.c.h.b16 %v143
      %v188 = vunpack.c.l.b16 %v144
      %v189 = vunpack.c.h.b16 %v144
      %v190 = vunpack.c.l.b16 %v145
      %v191 = vunpack.c.h.b16 %v145
      %v192 = vunpack.c.l.b16 %v146
      %v193 = vunpack.c.h.b16 %v146
      %v194 = vunpack.c.l.b16 %v147
      %v195 = vunpack.c.h.b16 %v147
      %v196 = vunpack.c.l.b16 %v148
      %v197 = vunpack.c.h.b16 %v148
      %v198 = vunpack.c.l.b16 %v149
      %v199 = vunpack.c.h.b16 %v149
      %v200 = vunpack.c.l.b16 %v150
      %v201 = vunpack.c.h.b16 %v150
      %v202 = vunpack.c.l.b16 %v151
      %v203 = vunpack.c.h.b16 %v151
      %v204 = vunpack.c.l.b16 %v152
      %v205 = vunpack.c.h.b16 %v152
      %v206 = vunpack.c.l.b16 %v153
      %v207 = vunpack.c.h.b16 %v153
      %v208 = vpack.c.b16 %v178, %v176
      %v209 = vpack.c.b16 %v179, %v177
      %v210 = vpack.c.b16 %v182, %v180
      %v211 = vpack.c.b16 %v183, %v181
      %v212 = vpack.c.b16 %v186, %v184
      %v213 = vpack.c.b16 %v187, %v185
      %v214 = vpack.c.b16 %v190, %v188
      %v215 = vpack.c.b16 %v191, %v189
      %v216 = vpack.c.b16 %v194, %v192
      %v217 = vpack.c.b16 %v195, %v193
      %v218 = vpack.c.b16 %v198, %v196
      %v219 = vpack.c.b16 %v199, %v197
      %v220 = vpack.c.b16 %v202, %v200
      %v221 = vpack.c.b16 %v203, %v201
      %v222 = vpack.c.b16 %v206, %v204
      %v223 = vpack.c.b16 %v207, %v205
      %240 = vmatpush.bf16.msra.mxu0 %v222
      %241 = vmatpush.bf16.msra.mxu0 %v220
      %242 = vmatpush.bf16.msra.mxu0 %v218
      %243 = vmatpush.bf16.msra.mxu0 %v216
      %244 = vmatpush.bf16.msra.mxu0 %v214
      %245 = vmatpush.bf16.msra.mxu0 %v212
      %246 = vmatpush.bf16.msra.mxu0 %v210
      %247 = vmatpush.bf16.msra.mxu0 %v208
      %248 = vmatmul.bf16.gmra.mxu0 %v158
      %v249 = vpop.f32.mrf.mxu0
      %v250 = vadd.f32 0.0, %v249
      %v251 = vpop.f32.mrf.mxu0
      %v252 = vadd.f32 0.0, %v251
      %253 = vdwg.mxu0
      %254 = vmatpush.bf16.msra.mxu0 %v223
      %255 = vmatpush.bf16.msra.mxu0 %v221
      %256 = vmatpush.bf16.msra.mxu0 %v219
      %257 = vmatpush.bf16.msra.mxu0 %v217
      %258 = vmatpush.bf16.msra.mxu0 %v215
      %259 = vmatpush.bf16.msra.mxu0 %v213
      %260 = vmatpush.bf16.msra.mxu0 %v211
      %261 = vmatpush.bf16.msra.mxu0 %v209
      %262 = vmatmul.bf16.gmra.mxu0 %v158
      %v263 = vpop.f32.mrf.mxu0
      %v264 = vadd.f32 0.0, %v263
      %v265 = vpop.f32.mrf.mxu0
      %v266 = vadd.f32 0.0, %v265
      %267 = vdwg.mxu0
      %268 = vst [vmem:[#allocation3] sm:$0xff] %v250
      %269 = vst [vmem:[#allocation3 + $0x8] sm:$0xff] %v264
      %270 = vst [vmem:[#allocation3 + $0x10] sm:$0xff] %v252
      %271 = vst [vmem:[#allocation3 + $0x18] sm:$0xff] %v266
    $region69: #{tpu_custom_call.1} parent=1 // pred_fallthru
      _
    %v272 = vld [vmem:[#allocation9] sm:$0xff]
    %v273 = vld [vmem:[#allocation9 + $0x8] sm:$0xff]
    %v274 = vld [vmem:[#allocation9 + $0x10] sm:$0xff]
    %v275 = vld [vmem:[#allocation9 + $0x18] sm:$0xff]
    %v276 = vunpack.c.0.s8 %v272
    %v277 = vunpack.c.1.s8 %v272
    %v278 = vunpack.c.2.s8 %v272
    %v279 = vunpack.c.3.s8 %v272
    %v280 = vunpack.c.0.s8 %v273
    %v281 = vunpack.c.1.s8 %v273
    %v282 = vunpack.c.2.s8 %v273
    %v283 = vunpack.c.3.s8 %v273
    %v284 = vunpack.c.0.s8 %v274
    %v285 = vunpack.c.1.s8 %v274
    %v286 = vunpack.c.2.s8 %v274
    %v287 = vunpack.c.3.s8 %v274
    %v288 = vunpack.c.0.s8 %v275
    %v289 = vunpack.c.1.s8 %v275
    %v290 = vunpack.c.2.s8 %v275
    %v291 = vunpack.c.3.s8 %v275
    %v292 = vcvt.s32.f32 %v276
    %v293 = vcvt.s32.f32 %v277
    %v294 = vcvt.s32.f32 %v278
    %v295 = vcvt.s32.f32 %v279
    %v296 = vcvt.s32.f32 %v280
    %v297 = vcvt.s32.f32 %v281
    %v298 = vcvt.s32.f32 %v282
    %v299 = vcvt.s32.f32 %v283
    %v300 = vcvt.s32.f32 %v284
    %v301 = vcvt.s32.f32 %v285
    %v302 = vcvt.s32.f32 %v286
    %v303 = vcvt.s32.f32 %v287
    %v304 = vcvt.s32.f32 %v288
    %v305 = vcvt.s32.f32 %v289
    %v306 = vcvt.s32.f32 %v290
    %v307 = vcvt.s32.f32 %v291
    %v308 = vpack.c.bf16 %v293, %v292
    %v309 = vpack.c.bf16 %v295, %v294
    %v310 = vpack.c.bf16 %v297, %v296
    %v311 = vpack.c.bf16 %v299, %v298
    %v312 = vpack.c.bf16 %v301, %v300
    %v313 = vpack.c.bf16 %v303, %v302
    %v314 = vpack.c.bf16 %v305, %v304
    %v315 = vpack.c.bf16 %v307, %v306
    %v316 = vld [vmem:[#allocation2] sm:$0xff]
    %v317 = vld [vmem:[#allocation2 + $0x8] sm:$0xff]
    %v318 = vld [vmem:[#allocation7] sm:$0xf]
    %v319 = vld [vmem:[#allocation7 + $0x4] sm:$0xf]
    %v322 = vunpack.c.l.b16 %v318
    %v323 = vunpack.c.l.b16 %v319
    %v324 = vpack.c.b16 %v323, %v322
    %326 = vmatpush.bf16.msra.mxu0 %v315
    %327 = vmatpush.bf16.msra.mxu0 %v314
    %328 = vmatpush.bf16.msra.mxu0 %v313
    %329 = vmatpush.bf16.msra.mxu0 %v312
    %330 = vmatpush.bf16.msra.mxu0 %v311
    %331 = vmatpush.bf16.msra.mxu0 %v310
    %332 = vmatpush.bf16.msra.mxu0 %v309
    %333 = vmatpush.bf16.msra.mxu0 %v308
    %334 = vmatmul.bf16.gmra.mxu0 %v324
    %v335 = vpop.f32.mrf.mxu0
    %v336 = vadd.f32 0.0, %v335
    %v337 = vpop.f32.mrf.mxu0
    %v338 = vadd.f32 0.0, %v337
    %339 = vdwg.mxu0
    %v340 = vadd.f32 %v316, %v336
    %v341 = vadd.f32 %v317, %v338
    %342 = vst [vmem:[#allocation2] sm:$0xff] %v340
    %343 = vst [vmem:[#allocation2 + $0x8] sm:$0xff] %v341
    // Predicated region
    $region70: #{tpu_custom_call.1} parent=1 // pred_check
      %p344 = pneg %p130
    $region71: #{tpu_custom_call.1} parent=1 // pred_check_branch
      %346 = sbr.rel (%p344) target = $region73
    $region72: #{tpu_custom_call.1} parent=1 // pred_region
      %v347 = vld [vmem:[#allocation2] sm:$0xff]
      %v348 = vld [vmem:[#allocation2 + $0x8] sm:$0xff]
      %v349 = vld [vmem:[%s3] sm:$0x1]
      %v351 = vperm.slane %v349, 0
      %v353 = vmul.f32 %v347, %v351
      %v354 = vmul.f32 %v348, %v351
      %v355 = vld [vmem:[%s4] sm:$0x1]
      %v357 = vperm.slane %v355, 0
      %v359 = vadd.f32 %v353, %v357
      %v360 = vadd.f32 %v354, %v357
      %v361 = vld [vmem:[#allocation3] sm:$0xff]
      %v362 = vld [vmem:[#allocation3 + $0x10] sm:$0xff]
      %v363 = vld [vmem:[#allocation3 + $0x8] sm:$0xff]
      %v364 = vld [vmem:[#allocation3 + $0x18] sm:$0xff]
      %v365 = vpack.c.bf16 %v360, %v359
      %v366 = vld [vmem:[#allocation12] sm:$0xf]
      %v367 = vld [vmem:[#allocation12 + $0x4] sm:$0xf]
      %v368 = vld [vmem:[#allocation12 + $0x8] sm:$0xf]
      %v369 = vld [vmem:[#allocation12 + $0xc] sm:$0xf]
      %v370 = vld [vmem:[#allocation12 + $0x10] sm:$0xf]
      %v371 = vld [vmem:[#allocation12 + $0x14] sm:$0xf]
      %v372 = vld [vmem:[#allocation12 + $0x18] sm:$0xf]
      %v373 = vld [vmem:[#allocation12 + $0x1c] sm:$0xf]
      %v374 = vld [vmem:[#allocation12 + $0x20] sm:$0xf]
      %v375 = vld [vmem:[#allocation12 + $0x24] sm:$0xf]
      %v376 = vld [vmem:[#allocation12 + $0x28] sm:$0xf]
      %v377 = vld [vmem:[#allocation12 + $0x2c] sm:$0xf]
      %v378 = vld [vmem:[#allocation12 + $0x30] sm:$0xf]
      %v379 = vld [vmem:[#allocation12 + $0x34] sm:$0xf]
      %v380 = vld [vmem:[#allocation12 + $0x38] sm:$0xf]
      %v381 = vld [vmem:[#allocation12 + $0x3c] sm:$0xf]
      %v398 = vunpack.c.l.b16 %v366
      %v399 = vunpack.c.l.b16 %v367
      %v400 = vunpack.c.l.b16 %v368
      %v401 = vunpack.c.l.b16 %v369
      %v402 = vunpack.c.l.b16 %v370
      %v403 = vunpack.c.l.b16 %v371
      %v404 = vunpack.c.l.b16 %v372
      %v405 = vunpack.c.l.b16 %v373
      %v406 = vunpack.c.l.b16 %v374
      %v407 = vunpack.c.l.b16 %v375
      %v408 = vunpack.c.l.b16 %v376
      %v409 = vunpack.c.l.b16 %v377
      %v410 = vunpack.c.l.b16 %v378
      %v411 = vunpack.c.l.b16 %v379
      %v412 = vunpack.c.l.b16 %v380
      %v413 = vunpack.c.l.b16 %v381
      %v414 = vpack.c.b16 %v399, %v398
      %v415 = vpack.c.b16 %v401, %v400
      %v416 = vpack.c.b16 %v403, %v402
      %v417 = vpack.c.b16 %v405, %v404
      %v418 = vpack.c.b16 %v407, %v406
      %v419 = vpack.c.b16 %v409, %v408
      %v420 = vpack.c.b16 %v411, %v410
      %v421 = vpack.c.b16 %v413, %v412
      %430 = vmatpush.bf16.msra.mxu0 %v421
      %431 = vmatpush.bf16.msra.mxu0 %v420
      %432 = vmatpush.bf16.msra.mxu0 %v419
      %433 = vmatpush.bf16.msra.mxu0 %v418
      %434 = vmatpush.bf16.msra.mxu0 %v417
      %435 = vmatpush.bf16.msra.mxu0 %v416
      %436 = vmatpush.bf16.msra.mxu0 %v415
      %437 = vmatpush.bf16.msra.mxu0 %v414
      %438 = vmatmul.bf16.gmra.mxu0 %v365
      %v439 = vpop.f32.mrf.mxu0
      %v440 = vadd.f32 0.0, %v439
      %v441 = vpop.f32.mrf.mxu0
      %v442 = vadd.f32 0.0, %v441
      %443 = vdwg.mxu0
      %v444 = vadd.f32 %v361, %v440
      %v445 = vadd.f32 %v362, %v442
      %v446 = vld [vmem:[%s7] sm:$0x1]
      %v448 = vperm.slane %v446, 0
      %v450 = vadd.f32 %v444, %v448
      %v451 = vadd.f32 %v445, %v448
      %v452 = vxor.u32 %v450, 2147483648
      %v453 = vxor.u32 %v451, 2147483648
      %v454 = vmul.f32 %v452, 1.442695
      %v455 = vpow.pop %v454
      %v456 = vmul.f32 %v453, 1.442695
      %v457 = vpow.pop %v456
      %v458 = vadd.f32 %v455, 1.0
      %v459 = vadd.f32 %v457, 1.0
      %v460 = vrcp.pop %v458
      %v461 = vmul.f32 %v458, %v460
      %v462 = vsub.f32 1.0, %v461
      %v463 = vmul.f32 %v460, %v462
      %v464 = vadd.f32 %v460, %v463
      %vm465 = vweird.f32 %v458
      %vm466 = vweird.f32 %v460
      %vm467 = vmor %vm465, %vm466
      %v468 = vsel %vm467, %v460, %v464
      %v469 = vand.u32 2147483647, %v458
      %vm470 = vcmp.eq.f32.partialorder %v469, 8.507059e+37
      %v471 = vand.u32 %v458, 2147483648
      %v472 = vor.u32 1.1754944e-38, %v471
      %v473 = vsel %vm470, %v472, %v468
      %v474 = vmul.f32 1.0, %v473
      %v475 = vrcp.pop %v459
      %v476 = vmul.f32 %v459, %v475
      %v477 = vsub.f32 1.0, %v476
      %v478 = vmul.f32 %v475, %v477
      %v479 = vadd.f32 %v475, %v478
      %vm480 = vweird.f32 %v459
      %vm481 = vweird.f32 %v475
      %vm482 = vmor %vm480, %vm481
      %v483 = vsel %vm482, %v475, %v479
      %v484 = vand.u32 2147483647, %v459
      %vm485 = vcmp.eq.f32.partialorder %v484, 8.507059e+37
      %v486 = vand.u32 %v459, 2147483648
      %v487 = vor.u32 1.1754944e-38, %v486
      %v488 = vsel %vm485, %v487, %v483
      %v489 = vmul.f32 1.0, %v488
      %v490 = vmul.f32 %v474, %v359
      %v491 = vmul.f32 %v489, %v360
      %v492 = vpack.c.bf16 %v491, %v490
      %v493 = vld [vmem:[#allocation13] sm:$0xf]
      %v494 = vld [vmem:[#allocation13 + $0x4] sm:$0xf]
      %v495 = vld [vmem:[#allocation13 + $0x8] sm:$0xf]
      %v496 = vld [vmem:[#allocation13 + $0xc] sm:$0xf]
      %v497 = vld [vmem:[#allocation13 + $0x10] sm:$0xf]
      %v498 = vld [vmem:[#allocation13 + $0x14] sm:$0xf]
      %v499 = vld [vmem:[#allocation13 + $0x18] sm:$0xf]
      %v500 = vld [vmem:[#allocation13 + $0x1c] sm:$0xf]
      %v501 = vld [vmem:[#allocation13 + $0x20] sm:$0xf]
      %v502 = vld [vmem:[#allocation13 + $0x24] sm:$0xf]
      %v503 = vld [vmem:[#allocation13 + $0x28] sm:$0xf]
      %v504 = vld [vmem:[#allocation13 + $0x2c] sm:$0xf]
      %v505 = vld [vmem:[#allocation13 + $0x30] sm:$0xf]
      %v506 = vld [vmem:[#allocation13 + $0x34] sm:$0xf]
      %v507 = vld [vmem:[#allocation13 + $0x38] sm:$0xf]
      %v508 = vld [vmem:[#allocation13 + $0x3c] sm:$0xf]
      %v525 = vunpack.c.l.b16 %v493
      %v526 = vunpack.c.l.b16 %v494
      %v527 = vunpack.c.l.b16 %v495
      %v528 = vunpack.c.l.b16 %v496
      %v529 = vunpack.c.l.b16 %v497
      %v530 = vunpack.c.l.b16 %v498
      %v531 = vunpack.c.l.b16 %v499
      %v532 = vunpack.c.l.b16 %v500
      %v533 = vunpack.c.l.b16 %v501
      %v534 = vunpack.c.l.b16 %v502
      %v535 = vunpack.c.l.b16 %v503
      %v536 = vunpack.c.l.b16 %v504
      %v537 = vunpack.c.l.b16 %v505
      %v538 = vunpack.c.l.b16 %v506
      %v539 = vunpack.c.l.b16 %v507
      %v540 = vunpack.c.l.b16 %v508
      %v541 = vpack.c.b16 %v526, %v525
      %v542 = vpack.c.b16 %v528, %v527
      %v543 = vpack.c.b16 %v530, %v529
      %v544 = vpack.c.b16 %v532, %v531
      %v545 = vpack.c.b16 %v534, %v533
      %v546 = vpack.c.b16 %v536, %v535
      %v547 = vpack.c.b16 %v538, %v537
      %v548 = vpack.c.b16 %v540, %v539
      %557 = vmatpush.bf16.msra.mxu0 %v548
      %558 = vmatpush.bf16.msra.mxu0 %v547
      %559 = vmatpush.bf16.msra.mxu0 %v546
      %560 = vmatpush.bf16.msra.mxu0 %v545
      %561 = vmatpush.bf16.msra.mxu0 %v544
      %562 = vmatpush.bf16.msra.mxu0 %v543
      %563 = vmatpush.bf16.msra.mxu0 %v542
      %564 = vmatpush.bf16.msra.mxu0 %v541
      %565 = vmatmul.bf16.gmra.mxu0 %v492
      %v566 = vpop.f32.mrf.mxu0
      %v567 = vadd.f32 0.0, %v566
      %v568 = vpop.f32.mrf.mxu0
      %v569 = vadd.f32 0.0, %v568
      %570 = vdwg.mxu0
      %v571 = vadd.f32 %v363, %v567
      %v572 = vadd.f32 %v364, %v569
      %v573 = vld [vmem:[%s9] sm:$0x1]
      %v575 = vperm.slane %v573, 0
      %v577 = vadd.f32 %v571, %v575
      %v578 = vadd.f32 %v572, %v575
      %v579 = vmax.f32 %v577, 0.0
      %v580 = vmax.f32 %v578, 0.0
      %581 = vst [vmem:[#allocation15] sm:$0xff] %v579
      %582 = vst [vmem:[#allocation15 + $0x8] sm:$0xff] %v580
    $region73: #{tpu_custom_call.1} parent=1 // pred_fallthru
      _
    // Predicated region
    $region74: #{tpu_custom_call.1} parent=1 // pred_check
      _
    $region75: #{tpu_custom_call.1} parent=1 // pred_check_branch
      %584 = sbr.rel (0) target = $region77
    $region76: #{tpu_custom_call.1} parent=1 // pred_region
      %586 = vsyncadd [#allocation6], 0
      %s587 = sshll.u32 [#allocation15], 4
      %s588 = int_to_ptr.vmem [resolvable:$true] %s587
      %s589 = sshll.u32 %s10, 4
      %s590 = int_to_ptr.hbm [resolvable:$true] %s589
      %595 = dma.vmem_to_hbm [thread:$0]  %s588, 256, %s590, [#allocation6], 128, 128, 8
    $region77: #{tpu_custom_call.1} parent=1 // pred_fallthru
      _
    // Predicated region
    $region78: #{tpu_custom_call.1} parent=1 // pred_check
      _
    $region79: #{tpu_custom_call.1} parent=1 // pred_check_branch
      %597 = sbr.rel (0) target = $region81
    $region80: #{tpu_custom_call.1} parent=1 // pred_region
      %599 = dma.done [#allocation6], 256
    $region81: #{tpu_custom_call.1} parent=1 // pred_fallthru
      _
    %600 = vsyncpa [#allocation5], 1
    %601 = vsyncpa [#allocation8], 1
    %602 = vsyncpa [#allocation11], 1
    %603 = vsyncpa [#allocation14], 1
    %604 = vsyncpa [#allocation6], 1

// kernel: tpu_custom_call.1
$region0: #{tpu_custom_call.1}
  #allocation0 [shape = 'u32[]', space=smem, size = 0x4, offset = 0x4, fixed_abs, tag = 'smem constant byte address 0x4 - core index']
  #allocation1 [shape = 'u32[72,128]{1,0:T(1,128)}', space=vmem, size = 0x9000, scoped, tag = 'internal scratch']
  #allocation2 [shape = 'f32[16,128]{1,0:T(8,128)}', space=vmem, size = 0x2000, scoped, tag = 'scratch operand']
  #allocation3 [shape = 'f32[16,256]{1,0:T(8,128)}', space=vmem, size = 0x4000, scoped, tag = 'scratch operand']
  %s0 = inlined_call_operand.hbm [shape: bf16[16,128], index: 0, kind: input, shape index: {}]
  %s1 = inlined_call_operand.hbm [shape: bf16[16,128], index: 1, kind: input, shape index: {}]
  %s2 = inlined_call_operand.hbm [shape: s8[128,128], index: 2, kind: input, shape index: {}]
  %s3 = inlined_call_operand.vmem [shape: f32[1,128], index: 3, kind: input, shape index: {}]
  %s4 = inlined_call_operand.vmem [shape: f32[1,128], index: 4, kind: input, shape index: {}]
  %s5 = inlined_call_operand.hbm [shape: bf16[128,256], index: 5, kind: input, shape index: {}]
  %s6 = inlined_call_operand.hbm [shape: bf16[128,128], index: 6, kind: input, shape index: {}]
  %s7 = inlined_call_operand.vmem [shape: f32[1,128], index: 7, kind: input, shape index: {}]
  %s8 = inlined_call_operand.hbm [shape: bf16[128,128], index: 8, kind: input, shape index: {}]
  %s9 = inlined_call_operand.vmem [shape: f32[1,128], index: 9, kind: input, shape index: {}]
  %s10 = inlined_call_operand.hbm [shape: f32[16,128], index: 10, kind: output, shape index: {}]
  %s11 = sld [smem:[#allocation0]]
  $region82: #{tpu_custom_call.1} parent=0
    _
  %s13 = ssub.s32 1, %s11
  %s14 = scalar_select 0, %s13, %s11
  $region1: #{tpu_custom_call.1} parent=0
    #allocation4 [shape = 'u8[4096]{0}', space=vmem, size = 0x1000, scoped, tag = 'input window, operand 0, single buffered']
    #allocation5 [shape = 's32[1]{0}', space=sflag, size = 0x4, scoped, tag = 'scoped memory for tpu_custom_call.1']
    #allocation6 [shape = 's32[1]{0}', space=sflag, size = 0x4, scoped, tag = 'scoped memory for tpu_custom_call.1']
    #allocation7 [shape = 'u8[4096]{0}', space=vmem, size = 0x1000, scoped, tag = 'input window, operand 1, single buffered']
    #allocation8 [shape = 's32[1]{0}', space=sflag, size = 0x4, scoped, tag = 'scoped memory for tpu_custom_call.1']
    #allocation9 [shape = 'u8[16384]{0}', space=vmem, size = 0x4000, scoped, tag = 'input window, operand 2, single buffered']
    #allocation10 [shape = 'u8[65536]{0}', space=vmem, size = 0x10000, scoped, tag = 'input window, operand 5, single buffered']
    #allocation11 [shape = 's32[1]{0}', space=sflag, size = 0x4, scoped, tag = 'scoped memory for tpu_custom_call.1']
    #allocation12 [shape = 'u8[32768]{0}', space=vmem, size = 0x8000, scoped, tag = 'input window, operand 6, single buffered']
    #allocation13 [shape = 'u8[32768]{0}', space=vmem, size = 0x8000, scoped, tag = 'input window, operand 8, single buffered']
    #allocation14 [shape = 's32[1]{0}', space=sflag, size = 0x4, scoped, tag = 'scoped memory for tpu_custom_call.1']
    #allocation15 [shape = 'u8[8192]{0}', space=vmem, size = 0x2000, scoped, tag = 'output window, operand 0, single buffered']
    %15 = vsyncpa [#allocation5], 0
    %16 = vsyncpa [#allocation8], 0
    %17 = vsyncpa [#allocation11], 0
    %18 = vsyncpa [#allocation14], 0
    %19 = vsyncpa [#allocation6], 0
    // Predicated region
    $region2: #{tpu_custom_call.1} parent=1 // pred_check
      _
    $region3: #{tpu_custom_call.1} parent=1 // pred_check_branch
      %21 = sbr.rel (0) target = $region5
    $region4: #{tpu_custom_call.1} parent=1 // pred_region
      %23 = vsyncadd [#allocation5], 0
      %s24 = sshll.u32 %s0, 4
      %s25 = int_to_ptr.hbm [resolvable:$true] %s24
      %s26 = sshll.u32 [#allocation4], 4
      %s27 = int_to_ptr.vmem [resolvable:$true] %s26
      %32 = dma.hbm_to_vmem [thread:$0]  %s25, 128, %s27, [#allocation5], 64, 64, 4
    $region5: #{tpu_custom_call.1} parent=1 // pred_fallthru
      _
    // Predicated region
    $region6: #{tpu_custom_call.1} parent=1 // pred_check
      _
    $region7: #{tpu_custom_call.1} parent=1 // pred_check_branch
      %34 = sbr.rel (0) target = $region9
    $region8: #{tpu_custom_call.1} parent=1 // pred_region
      %36 = vsyncadd [#allocation8], 0
      %s37 = sshll.u32 %s1, 4
      %s38 = int_to_ptr.hbm [resolvable:$true] %s37
      %s39 = sshll.u32 [#allocation7], 4
      %s40 = int_to_ptr.vmem [resolvable:$true] %s39
      %45 = dma.hbm_to_vmem [thread:$0]  %s38, 128, %s40, [#allocation8], 64, 64, 4
    $region9: #{tpu_custom_call.1} parent=1 // pred_fallthru
      _
    // Predicated region
    $region10: #{tpu_custom_call.1} parent=1 // pred_check
      _
    $region11: #{tpu_custom_call.1} parent=1 // pred_check_branch
      %47 = sbr.rel (0) target = $region13
    $region12: #{tpu_custom_call.1} parent=1 // pred_region
      %49 = vsyncadd [#allocation8], 0
      %s50 = sshll.u32 %s2, 4
      %s51 = int_to_ptr.hbm [resolvable:$true] %s50
      %s52 = sshll.u32 [#allocation9], 4
      %s53 = int_to_ptr.vmem [resolvable:$true] %s52
      %58 = dma.hbm_to_vmem [thread:$0]  %s51, 512, %s53, [#allocation8], 128, 128, 8
    $region13: #{tpu_custom_call.1} parent=1 // pred_fallthru
      _
    // Predicated region
    $region14: #{tpu_custom_call.1} parent=1 // pred_check
      _
    $region15: #{tpu_custom_call.1} parent=1 // pred_check_branch
      %60 = sbr.rel (0) target = $region17
    $region16: #{tpu_custom_call.1} parent=1 // pred_region
      _
    $region17: #{tpu_custom_call.1} parent=1 // pred_fallthru
      _
    // Predicated region
    $region18: #{tpu_custom_call.1} parent=1 // pred_check
      _
    $region19: #{tpu_custom_call.1} parent=1 // pred_check_branch
      %62 = sbr.rel (0) target = $region21
    $region20: #{tpu_custom_call.1} parent=1 // pred_region
      _
    $region21: #{tpu_custom_call.1} parent=1 // pred_fallthru
      _
    // Predicated region
    $region22: #{tpu_custom_call.1} parent=1 // pred_check
      _
    $region23: #{tpu_custom_call.1} parent=1 // pred_check_branch
      %64 = sbr.rel (0) target = $region25
    $region24: #{tpu_custom_call.1} parent=1 // pred_region
      %66 = vsyncadd [#allocation11], 0
      %s67 = sshll.u32 %s5, 4
      %s68 = int_to_ptr.hbm [resolvable:$true] %s67
      %s69 = sshll.u32 [#allocation10], 4
      %s70 = int_to_ptr.vmem [resolvable:$true] %s69
      %75 = dma.hbm_to_vmem [thread:$0]  %s68, 2048, %s70, [#allocation11], 128, 128, 8
    $region25: #{tpu_custom_call.1} parent=1 // pred_fallthru
      _
    // Predicated region
    $region26: #{tpu_custom_call.1} parent=1 // pred_check
      _
    $region27: #{tpu_custom_call.1} parent=1 // pred_check_branch
      %77 = sbr.rel (0) target = $region29
    $region28: #{tpu_custom_call.1} parent=1 // pred_region
      %79 = vsyncadd [#allocation11], 0
      %s80 = sshll.u32 %s6, 4
      %s81 = int_to_ptr.hbm [resolvable:$true] %s80
      %s82 = sshll.u32 [#allocation12], 4
      %s83 = int_to_ptr.vmem [resolvable:$true] %s82
      %88 = dma.hbm_to_vmem [thread:$0]  %s81, 1024, %s83, [#allocation11], 64, 64, 4
    $region29: #{tpu_custom_call.1} parent=1 // pred_fallthru
      _
    // Predicated region
    $region30: #{tpu_custom_call.1} parent=1 // pred_check
      _
    $region31: #{tpu_custom_call.1} parent=1 // pred_check_branch
      %90 = sbr.rel (0) target = $region33
    $region32: #{tpu_custom_call.1} parent=1 // pred_region
      _
    $region33: #{tpu_custom_call.1} parent=1 // pred_fallthru
      _
    // Predicated region
    $region34: #{tpu_custom_call.1} parent=1 // pred_check
      _
    $region35: #{tpu_custom_call.1} parent=1 // pred_check_branch
      %92 = sbr.rel (0) target = $region37
    $region36: #{tpu_custom_call.1} parent=1 // pred_region
      %94 = vsyncadd [#allocation14], 0
      %s95 = sshll.u32 %s8, 4
      %s96 = int_to_ptr.hbm [resolvable:$true] %s95
      %s97 = sshll.u32 [#allocation13], 4
      %s98 = int_to_ptr.vmem [resolvable:$true] %s97
      %103 = dma.hbm_to_vmem [thread:$0]  %s96, 1024, %s98, [#allocation14], 64, 64, 4
    $region37: #{tpu_custom_call.1} parent=1 // pred_fallthru
      _
    // Predicated region
    $region38: #{tpu_custom_call.1} parent=1 // pred_check
      _
    $region39: #{tpu_custom_call.1} parent=1 // pred_check_branch
      %105 = sbr.rel (0) target = $region41
    $region40: #{tpu_custom_call.1} parent=1 // pred_region
      _
    $region41: #{tpu_custom_call.1} parent=1 // pred_fallthru
      _
    // Predicated region
    $region42: #{tpu_custom_call.1} parent=1 // pred_check
      _
    $region43: #{tpu_custom_call.1} parent=1 // pred_check_branch
      %107 = sbr.rel (0) target = $region45
    $region44: #{tpu_custom_call.1} parent=1 // pred_region
      %109 = dma.done [#allocation5], 128
    $region45: #{tpu_custom_call.1} parent=1 // pred_fallthru
      _
    // Predicated region
    $region46: #{tpu_custom_call.1} parent=1 // pred_check
      _
    $region47: #{tpu_custom_call.1} parent=1 // pred_check_branch
      %111 = sbr.rel (0) target = $region49
    $region48: #{tpu_custom_call.1} parent=1 // pred_region
      %113 = dma.done [#allocation8], 128
    $region49: #{tpu_custom_call.1} parent=1 // pred_fallthru
      _
    // Predicated region
    $region50: #{tpu_custom_call.1} parent=1 // pred_check
      _
    $region51: #{tpu_custom_call.1} parent=1 // pred_check_branch
      %115 = sbr.rel (0) target = $region53
    $region52: #{tpu_custom_call.1} parent=1 // pred_region
      %117 = dma.done [#allocation8], 512
    $region53: #{tpu_custom_call.1} parent=1 // pred_fallthru
      _
    // Predicated region
    $region54: #{tpu_custom_call.1} parent=1 // pred_check
      _
    $region55: #{tpu_custom_call.1} parent=1 // pred_check_branch
      %119 = sbr.rel (0) target = $region57
    $region56: #{tpu_custom_call.1} parent=1 // pred_region
      %121 = dma.done [#allocation11], 2048
    $region57: #{tpu_custom_call.1} parent=1 // pred_fallthru
      _
    // Predicated region
    $region58: #{tpu_custom_call.1} parent=1 // pred_check
      _
    $region59: #{tpu_custom_call.1} parent=1 // pred_check_branch
      %123 = sbr.rel (0) target = $region61
    $region60: #{tpu_custom_call.1} parent=1 // pred_region
      %125 = dma.done [#allocation11], 1024
    $region61: #{tpu_custom_call.1} parent=1 // pred_fallthru
      _
    // Predicated region
    $region62: #{tpu_custom_call.1} parent=1 // pred_check
      _
    $region63: #{tpu_custom_call.1} parent=1 // pred_check_branch
      %127 = sbr.rel (0) target = $region65
    $region64: #{tpu_custom_call.1} parent=1 // pred_region
      %129 = dma.done [#allocation14], 1024
    $region65: #{tpu_custom_call.1} parent=1 // pred_fallthru
      _
    %p130 = scmp.eq.s32.totalorder 0, 0
    // Predicated region
    $region66: #{tpu_custom_call.1} parent=1 // pred_check
      %p131 = pneg %p130
    $region67: #{tpu_custom_call.1} parent=1 // pred_check_branch
      %133 = sbr.rel (%p131) target = $region69
    $region68: #{tpu_custom_call.1} parent=1 // pred_region
      %134 = vst [vmem:[#allocation2] sm:$0xff] 0.0
      %135 = vst [vmem:[#allocation2 + $0x8] sm:$0xff] 0.0
      %v136 = vld [vmem:[#allocation4] sm:$0xf]
      %v137 = vld [vmem:[#allocation4 + $0x4] sm:$0xf]
      %v138 = vld [vmem:[#allocation10] sm:$0xff]
      %v139 = vld [vmem:[#allocation10 + $0x8] sm:$0xff]
      %v140 = vld [vmem:[#allocation10 + $0x10] sm:$0xff]
      %v141 = vld [vmem:[#allocation10 + $0x18] sm:$0xff]
      %v142 = vld [vmem:[#allocation10 + $0x20] sm:$0xff]
      %v143 = vld [vmem:[#allocation10 + $0x28] sm:$0xff]
      %v144 = vld [vmem:[#allocation10 + $0x30] sm:$0xff]
      %v145 = vld [vmem:[#allocation10 + $0x38] sm:$0xff]
      %v146 = vld [vmem:[#allocation10 + $0x40] sm:$0xff]
      %v147 = vld [vmem:[#allocation10 + $0x48] sm:$0xff]
      %v148 = vld [vmem:[#allocation10 + $0x50] sm:$0xff]
      %v149 = vld [vmem:[#allocation10 + $0x58] sm:$0xff]
      %v150 = vld [vmem:[#allocation10 + $0x60] sm:$0xff]
      %v151 = vld [vmem:[#allocation10 + $0x68] sm:$0xff]
      %v152 = vld [vmem:[#allocation10 + $0x70] sm:$0xff]
      %v153 = vld [vmem:[#allocation10 + $0x78] sm:$0xff]
      %v156 = vunpack.c.l.b16 %v136
      %v157 = vunpack.c.l.b16 %v137
      %v158 = vpack.c.b16 %v157, %v156
      %v176 = vunpack.c.l.b16 %v138
      %v177 = vunpack.c.h.b16 %v138
      %v178 = vunpack.c.l.b16 %v139
      %v179 = vunpack.c.h.b16 %v139
      %v180 = vunpack.c.l.b16 %v140
      %v181 = vunpack.c.h.b16 %v140
      %v182 = vunpack.c.l.b16 %v141
      %v183 = vunpack.c.h.b16 %v141
      %v184 = vunpack.c.l.b16 %v142
      %v185 = vunpack.c.h.b16 %v142
      %v186 = vunpack.c.l.b16 %v143
      %v187 = vunpack.c.h.b16 %v143
      %v188 = vunpack.c.l.b16 %v144
      %v189 = vunpack.c.h.b16 %v144
      %v190 = vunpack.c.l.b16 %v145
      %v191 = vunpack.c.h.b16 %v145
      %v192 = vunpack.c.l.b16 %v146
      %v193 = vunpack.c.h.b16 %v146
      %v194 = vunpack.c.l.b16 %v147
      %v195 = vunpack.c.h.b16 %v147
      %v196 = vunpack.c.l.b16 %v148
      %v197 = vunpack.c.h.b16 %v148
      %v198 = vunpack.c.l.b16 %v149
      %v199 = vunpack.c.h.b16 %v149
      %v200 = vunpack.c.l.b16 %v150
      %v201 = vunpack.c.h.b16 %v150
      %v202 = vunpack.c.l.b16 %v151
      %v203 = vunpack.c.h.b16 %v151
      %v204 = vunpack.c.l.b16 %v152
      %v205 = vunpack.c.h.b16 %v152
      %v206 = vunpack.c.l.b16 %v153
      %v207 = vunpack.c.h.b16 %v153
      %v208 = vpack.c.b16 %v178, %v176
      %v209 = vpack.c.b16 %v179, %v177
      %v210 = vpack.c.b16 %v182, %v180
      %v211 = vpack.c.b16 %v183, %v181
      %v212 = vpack.c.b16 %v186, %v184
      %v213 = vpack.c.b16 %v187, %v185
      %v214 = vpack.c.b16 %v190, %v188
      %v215 = vpack.c.b16 %v191, %v189
      %v216 = vpack.c.b16 %v194, %v192
      %v217 = vpack.c.b16 %v195, %v193
      %v218 = vpack.c.b16 %v198, %v196
      %v219 = vpack.c.b16 %v199, %v197
      %v220 = vpack.c.b16 %v202, %v200
      %v221 = vpack.c.b16 %v203, %v201
      %v222 = vpack.c.b16 %v206, %v204
      %v223 = vpack.c.b16 %v207, %v205
      %240 = vmatpush.bf16.msra.mxu0 %v222
      %241 = vmatpush.bf16.msra.mxu0 %v220
      %242 = vmatpush.bf16.msra.mxu0 %v218
      %243 = vmatpush.bf16.msra.mxu0 %v216
      %244 = vmatpush.bf16.msra.mxu0 %v214
      %245 = vmatpush.bf16.msra.mxu0 %v212
      %246 = vmatpush.bf16.msra.mxu0 %v210
      %247 = vmatpush.bf16.msra.mxu0 %v208
      %248 = vmatmul.bf16.gmra.mxu0 %v158
      %v249 = vpop.f32.mrf.mxu0
      %v250 = vadd.f32 0.0, %v249
      %v251 = vpop.f32.mrf.mxu0
      %v252 = vadd.f32 0.0, %v251
      %253 = vdwg.mxu0
      %254 = vmatpush.bf16.msra.mxu0 %v223
      %255 = vmatpush.bf16.msra.mxu0 %v221
      %256 = vmatpush.bf16.msra.mxu0 %v219
      %257 = vmatpush.bf16.msra.mxu0 %v217
      %258 = vmatpush.bf16.msra.mxu0 %v215
      %259 = vmatpush.bf16.msra.mxu0 %v213
      %260 = vmatpush.bf16.msra.mxu0 %v211
      %261 = vmatpush.bf16.msra.mxu0 %v209
      %262 = vmatmul.bf16.gmra.mxu0 %v158
      %v263 = vpop.f32.mrf.mxu0
      %v264 = vadd.f32 0.0, %v263
      %v265 = vpop.f32.mrf.mxu0
      %v266 = vadd.f32 0.0, %v265
      %267 = vdwg.mxu0
      %268 = vst [vmem:[#allocation3] sm:$0xff] %v250
      %269 = vst [vmem:[#allocation3 + $0x8] sm:$0xff] %v264
      %270 = vst [vmem:[#allocation3 + $0x10] sm:$0xff] %v252
      %271 = vst [vmem:[#allocation3 + $0x18] sm:$0xff] %v266
    $region69: #{tpu_custom_call.1} parent=1 // pred_fallthru
      _
    %v272 = vld [vmem:[#allocation9] sm:$0xff]
    %v273 = vld [vmem:[#allocation9 + $0x8] sm:$0xff]
    %v274 = vld [vmem:[#allocation9 + $0x10] sm:$0xff]
    %v275 = vld [vmem:[#allocation9 + $0x18] sm:$0xff]
    %v276 = vunpack.c.0.s8 %v272
    %v277 = vunpack.c.1.s8 %v272
    %v278 = vunpack.c.2.s8 %v272
    %v279 = vunpack.c.3.s8 %v272
    %v280 = vunpack.c.0.s8 %v273
    %v281 = vunpack.c.1.s8 %v273
    %v282 = vunpack.c.2.s8 %v273
    %v283 = vunpack.c.3.s8 %v273
    %v284 = vunpack.c.0.s8 %v274
    %v285 = vunpack.c.1.s8 %v274
    %v286 = vunpack.c.2.s8 %v274
    %v287 = vunpack.c.3.s8 %v274
    %v288 = vunpack.c.0.s8 %v275
    %v289 = vunpack.c.1.s8 %v275
    %v290 = vunpack.c.2.s8 %v275
    %v291 = vunpack.c.3.s8 %v275
    %v292 = vcvt.s32.f32 %v276
    %v293 = vcvt.s32.f32 %v277
    %v294 = vcvt.s32.f32 %v278
    %v295 = vcvt.s32.f32 %v279
    %v296 = vcvt.s32.f32 %v280
    %v297 = vcvt.s32.f32 %v281
    %v298 = vcvt.s32.f32 %v282
    %v299 = vcvt.s32.f32 %v283
    %v300 = vcvt.s32.f32 %v284
    %v301 = vcvt.s32.f32 %v285
    %v302 = vcvt.s32.f32 %v286
    %v303 = vcvt.s32.f32 %v287
    %v304 = vcvt.s32.f32 %v288
    %v305 = vcvt.s32.f32 %v289
    %v306 = vcvt.s32.f32 %v290
    %v307 = vcvt.s32.f32 %v291
    %v308 = vpack.c.bf16 %v293, %v292
    %v309 = vpack.c.bf16 %v295, %v294
    %v310 = vpack.c.bf16 %v297, %v296
    %v311 = vpack.c.bf16 %v299, %v298
    %v312 = vpack.c.bf16 %v301, %v300
    %v313 = vpack.c.bf16 %v303, %v302
    %v314 = vpack.c.bf16 %v305, %v304
    %v315 = vpack.c.bf16 %v307, %v306
    %v316 = vld [vmem:[#allocation2] sm:$0xff]
    %v317 = vld [vmem:[#allocation2 + $0x8] sm:$0xff]
    %v318 = vld [vmem:[#allocation7] sm:$0xf]
    %v319 = vld [vmem:[#allocation7 + $0x4] sm:$0xf]
    %v322 = vunpack.c.l.b16 %v318
    %v323 = vunpack.c.l.b16 %v319
    %v324 = vpack.c.b16 %v323, %v322
    %326 = vmatpush.bf16.msra.mxu0 %v315
    %327 = vmatpush.bf16.msra.mxu0 %v314
    %328 = vmatpush.bf16.msra.mxu0 %v313
    %329 = vmatpush.bf16.msra.mxu0 %v312
    %330 = vmatpush.bf16.msra.mxu0 %v311
    %331 = vmatpush.bf16.msra.mxu0 %v310
    %332 = vmatpush.bf16.msra.mxu0 %v309
    %333 = vmatpush.bf16.msra.mxu0 %v308
    %334 = vmatmul.bf16.gmra.mxu0 %v324
    %v335 = vpop.f32.mrf.mxu0
    %v336 = vadd.f32 0.0, %v335
    %v337 = vpop.f32.mrf.mxu0
    %v338 = vadd.f32 0.0, %v337
    %339 = vdwg.mxu0
    %v340 = vadd.f32 %v316, %v336
    %v341 = vadd.f32 %v317, %v338
    %342 = vst [vmem:[#allocation2] sm:$0xff] %v340
    %343 = vst [vmem:[#allocation2 + $0x8] sm:$0xff] %v341
    // Predicated region
    $region70: #{tpu_custom_call.1} parent=1 // pred_check
      %p344 = pneg %p130
    $region71: #{tpu_custom_call.1} parent=1 // pred_check_branch
      %346 = sbr.rel (%p344) target = $region73
    $region72: #{tpu_custom_call.1} parent=1 // pred_region
      %v347 = vld [vmem:[#allocation2] sm:$0xff]
      %v348 = vld [vmem:[#allocation2 + $0x8] sm:$0xff]
      %v349 = vld [vmem:[%s3] sm:$0x1]
      %v351 = vperm.slane %v349, 0
      %v353 = vmul.f32 %v347, %v351
      %v354 = vmul.f32 %v348, %v351
      %v355 = vld [vmem:[%s4] sm:$0x1]
      %v357 = vperm.slane %v355, 0
      %v359 = vadd.f32 %v353, %v357
      %v360 = vadd.f32 %v354, %v357
      %v361 = vld [vmem:[#allocation3] sm:$0xff]
      %v362 = vld [vmem:[#allocation3 + $0x10] sm:$0xff]
      %v363 = vld [vmem:[#allocation3 + $0x8] sm:$0xff]
      %v364 = vld [vmem:[#allocation3 + $0x18] sm:$0xff]
      %v365 = vpack.c.bf16 %v360, %v359
      %v366 = vld [vmem:[#allocation12] sm:$0xf]
      %v367 = vld [vmem:[#allocation12 + $0x4] sm:$0xf]
      %v368 = vld [vmem:[#allocation12 + $0x8] sm:$0xf]
      %v369 = vld [vmem:[#allocation12 + $0xc] sm:$0xf]
      %v370 = vld [vmem:[#allocation12 + $0x10] sm:$0xf]
      %v371 = vld [vmem:[#allocation12 + $0x14] sm:$0xf]
      %v372 = vld [vmem:[#allocation12 + $0x18] sm:$0xf]
      %v373 = vld [vmem:[#allocation12 + $0x1c] sm:$0xf]
      %v374 = vld [vmem:[#allocation12 + $0x20] sm:$0xf]
      %v375 = vld [vmem:[#allocation12 + $0x24] sm:$0xf]
      %v376 = vld [vmem:[#allocation12 + $0x28] sm:$0xf]
      %v377 = vld [vmem:[#allocation12 + $0x2c] sm:$0xf]
      %v378 = vld [vmem:[#allocation12 + $0x30] sm:$0xf]
      %v379 = vld [vmem:[#allocation12 + $0x34] sm:$0xf]
      %v380 = vld [vmem:[#allocation12 + $0x38] sm:$0xf]
      %v381 = vld [vmem:[#allocation12 + $0x3c] sm:$0xf]
      %v398 = vunpack.c.l.b16 %v366
      %v399 = vunpack.c.l.b16 %v367
      %v400 = vunpack.c.l.b16 %v368
      %v401 = vunpack.c.l.b16 %v369
      %v402 = vunpack.c.l.b16 %v370
      %v403 = vunpack.c.l.b16 %v371
      %v404 = vunpack.c.l.b16 %v372
      %v405 = vunpack.c.l.b16 %v373
      %v406 = vunpack.c.l.b16 %v374
      %v407 = vunpack.c.l.b16 %v375
      %v408 = vunpack.c.l.b16 %v376
      %v409 = vunpack.c.l.b16 %v377
      %v410 = vunpack.c.l.b16 %v378
      %v411 = vunpack.c.l.b16 %v379
      %v412 = vunpack.c.l.b16 %v380
      %v413 = vunpack.c.l.b16 %v381
      %v414 = vpack.c.b16 %v399, %v398
      %v415 = vpack.c.b16 %v401, %v400
      %v416 = vpack.c.b16 %v403, %v402
      %v417 = vpack.c.b16 %v405, %v404
      %v418 = vpack.c.b16 %v407, %v406
      %v419 = vpack.c.b16 %v409, %v408
      %v420 = vpack.c.b16 %v411, %v410
      %v421 = vpack.c.b16 %v413, %v412
      %430 = vmatpush.bf16.msra.mxu0 %v421
      %431 = vmatpush.bf16.msra.mxu0 %v420
      %432 = vmatpush.bf16.msra.mxu0 %v419
      %433 = vmatpush.bf16.msra.mxu0 %v418
      %434 = vmatpush.bf16.msra.mxu0 %v417
      %435 = vmatpush.bf16.msra.mxu0 %v416
      %436 = vmatpush.bf16.msra.mxu0 %v415
      %437 = vmatpush.bf16.msra.mxu0 %v414
      %438 = vmatmul.bf16.gmra.mxu0 %v365
      %v439 = vpop.f32.mrf.mxu0
      %v440 = vadd.f32 0.0, %v439
      %v441 = vpop.f32.mrf.mxu0
      %v442 = vadd.f32 0.0, %v441
      %443 = vdwg.mxu0
      %v444 = vadd.f32 %v361, %v440
      %v445 = vadd.f32 %v362, %v442
      %v446 = vld [vmem:[%s7] sm:$0x1]
      %v448 = vperm.slane %v446, 0
      %v450 = vadd.f32 %v444, %v448
      %v451 = vadd.f32 %v445, %v448
      %v452 = vxor.u32 %v450, 2147483648
      %v453 = vxor.u32 %v451, 2147483648
      %v454 = vmul.f32 %v452, 1.442695
      %v455 = vpow.pop %v454
      %v456 = vmul.f32 %v453, 1.442695
      %v457 = vpow.pop %v456
      %v458 = vadd.f32 %v455, 1.0
      %v459 = vadd.f32 %v457, 1.0
      %v460 = vrcp.pop %v458
      %v461 = vmul.f32 %v458, %v460
      %v462 = vsub.f32 1.0, %v461
      %v463 = vmul.f32 %v460, %v462
      %v464 = vadd.f32 %v460, %v463
      %vm465 = vweird.f32 %v458
      %vm466 = vweird.f32 %v460
      %vm467 = vmor %vm465, %vm466
      %v468 = vsel %vm467, %v460, %v464
      %v469 = vand.u32 2147483647, %v458
      %vm470 = vcmp.eq.f32.partialorder %v469, 8.507059e+37
      %v471 = vand.u32 %v458, 2147483648
      %v472 = vor.u32 1.1754944e-38, %v471
      %v473 = vsel %vm470, %v472, %v468
      %v474 = vmul.f32 1.0, %v473
      %v475 = vrcp.pop %v459
      %v476 = vmul.f32 %v459, %v475
      %v477 = vsub.f32 1.0, %v476
      %v478 = vmul.f32 %v475, %v477
      %v479 = vadd.f32 %v475, %v478
      %vm480 = vweird.f32 %v459
      %vm481 = vweird.f32 %v475
      %vm482 = vmor %vm480, %vm481
      %v483 = vsel %vm482, %v475, %v479
      %v484 = vand.u32 2147483647, %v459
      %vm485 = vcmp.eq.f32.partialorder %v484, 8.507059e+37
      %v486 = vand.u32 %v459, 2147483648
      %v487 = vor.u32 1.1754944e-38, %v486
      %v488 = vsel %vm485, %v487, %v483
      %v489 = vmul.f32 1.0, %v488
      %v490 = vmul.f32 %v474, %v359
      %v491 = vmul.f32 %v489, %v360
      %v492 = vpack.c.bf16 %v491, %v490
      %v493 = vld [vmem:[#allocation13] sm:$0xf]
      %v494 = vld [vmem:[#allocation13 + $0x4] sm:$0xf]
      %v495 = vld [vmem:[#allocation13 + $0x8] sm:$0xf]
      %v496 = vld [vmem:[#allocation13 + $0xc] sm:$0xf]
      %v497 = vld [vmem:[#allocation13 + $0x10] sm:$0xf]
      %v498 = vld [vmem:[#allocation13 + $0x14] sm:$0xf]
      %v499 = vld [vmem:[#allocation13 + $0x18] sm:$0xf]
      %v500 = vld [vmem:[#allocation13 + $0x1c] sm:$0xf]
      %v501 = vld [vmem:[#allocation13 + $0x20] sm:$0xf]
      %v502 = vld [vmem:[#allocation13 + $0x24] sm:$0xf]
      %v503 = vld [vmem:[#allocation13 + $0x28] sm:$0xf]
      %v504 = vld [vmem:[#allocation13 + $0x2c] sm:$0xf]
      %v505 = vld [vmem:[#allocation13 + $0x30] sm:$0xf]
      %v506 = vld [vmem:[#allocation13 + $0x34] sm:$0xf]
      %v507 = vld [vmem:[#allocation13 + $0x38] sm:$0xf]
      %v508 = vld [vmem:[#allocation13 + $0x3c] sm:$0xf]
      %v525 = vunpack.c.l.b16 %v493
      %v526 = vunpack.c.l.b16 %v494
      %v527 = vunpack.c.l.b16 %v495
      %v528 = vunpack.c.l.b16 %v496
      %v529 = vunpack.c.l.b16 %v497
      %v530 = vunpack.c.l.b16 %v498
      %v531 = vunpack.c.l.b16 %v499
      %v532 = vunpack.c.l.b16 %v500
      %v533 = vunpack.c.l.b16 %v501
      %v534 = vunpack.c.l.b16 %v502
      %v535 = vunpack.c.l.b16 %v503
      %v536 = vunpack.c.l.b16 %v504
      %v537 = vunpack.c.l.b16 %v505
      %v538 = vunpack.c.l.b16 %v506
      %v539 = vunpack.c.l.b16 %v507
      %v540 = vunpack.c.l.b16 %v508
      %v541 = vpack.c.b16 %v526, %v525
      %v542 = vpack.c.b16 %v528, %v527
      %v543 = vpack.c.b16 %v530, %v529
      %v544 = vpack.c.b16 %v532, %v531
      %v545 = vpack.c.b16 %v534, %v533
      %v546 = vpack.c.b16 %v536, %v535
      %v547 = vpack.c.b16 %v538, %v537
      %v548 = vpack.c.b16 %v540, %v539
      %557 = vmatpush.bf16.msra.mxu0 %v548
      %558 = vmatpush.bf16.msra.mxu0 %v547
      %559 = vmatpush.bf16.msra.mxu0 %v546
      %560 = vmatpush.bf16.msra.mxu0 %v545
      %561 = vmatpush.bf16.msra.mxu0 %v544
      %562 = vmatpush.bf16.msra.mxu0 %v543
      %563 = vmatpush.bf16.msra.mxu0 %v542
      %564 = vmatpush.bf16.msra.mxu0 %v541
      %565 = vmatmul.bf16.gmra.mxu0 %v492
      %v566 = vpop.f32.mrf.mxu0
      %v567 = vadd.f32 0.0, %v566
      %v568 = vpop.f32.mrf.mxu0
      %v569 = vadd.f32 0.0, %v568
      %570 = vdwg.mxu0
      %v571 = vadd.f32 %v363, %v567
      %v572 = vadd.f32 %v364, %v569
      %v573 = vld [vmem:[%s9] sm:$0x1]
      %v575 = vperm.slane %v573, 0
      %v577 = vadd.f32 %v571, %v575
      %v578 = vadd.f32 %v572, %v575
      %v579 = vmax.f32 %v577, 0.0
      %v580 = vmax.f32 %v578, 0.0
      %581 = vst [vmem:[#allocation15] sm:$0xff] %v579
      %582 = vst [vmem:[#allocation15 + $0x8] sm:$0xff] %v580
    $region73: #{tpu_custom_call.1} parent=1 // pred_fallthru
      _
    // Predicated region
    $region74: #{tpu_custom_call.1} parent=1 // pred_check
      _
    $region75: #{tpu_custom_call.1} parent=1 // pred_check_branch
      %584 = sbr.rel (0) target = $region77
    $region76: #{tpu_custom_call.1} parent=1 // pred_region
      %586 = vsyncadd [#allocation6], 0
      %s587 = sshll.u32 [#allocation15], 4
      %s588 = int_to_ptr.vmem [resolvable:$true] %s587
      %s589 = sshll.u32 %s10, 4
      %s590 = int_to_ptr.hbm [resolvable:$true] %s589
      %595 = dma.vmem_to_hbm [thread:$0]  %s588, 256, %s590, [#allocation6], 128, 128, 8
    $region77: #{tpu_custom_call.1} parent=1 // pred_fallthru
      _
    // Predicated region
    $region78: #{tpu_custom_call.1} parent=1 // pred_check
      _
    $region79: #{tpu_custom_call.1} parent=1 // pred_check_branch
      %597 = sbr.rel (0) target = $region81
    $region80: #{tpu_custom_call.1} parent=1 // pred_region
      %599 = dma.done [#allocation6], 256
    $region81: #{tpu_custom_call.1} parent=1 // pred_fallthru
      _
    %600 = vsyncpa [#allocation5], 1
    %601 = vsyncpa [#allocation8], 1
    %602 = vsyncpa [#allocation11], 1
    %603 = vsyncpa [#allocation14], 1
    %604 = vsyncpa [#allocation6], 1

</llo_original>
